<compile_context>
chip_gen: v7x
topology: tpu7x:2x2x1
jax: 0.10.0
libtpu: 0.0.40
codegen_flags: <defaults>
</compile_context>

<pallas_src>
import jax
import jax.numpy as jnp
from jax.experimental import pallas as pl
from jax.experimental.pallas import tpu as pltpu


# ----------------------------------------------------------------------------
# Fused kernel: Embedded inputs (time-major, flattened) -> LSTM0 -> LSTM1 -> Linear
# Gate order matches PyTorch: [i, f, g, o].
# ----------------------------------------------------------------------------
def _fused_net_kernel(x_ref, wih0_ref, whh0_ref, b0_ref,
                      wih1_ref, whh1_ref, b1_ref,
                      wlin_ref, blin_ref, out_ref,
                      g_sc, y0_sc):
    TB = x_ref.shape[0]
    H = whh0_ref.shape[0]
    B = out_ref.shape[0]
    T = TB // B

    # Lane mask (hoisted out of the loops): gate g (tanh) occupies lanes [2H, 3H).
    lane = jax.lax.broadcasted_iota(jnp.int32, (B, 4 * H), 1)
    is_tanh_gate = jnp.logical_and(lane >= 2 * H, lane < 3 * H)

    def activate(gates):
        # Full-vreg sigmoid + tanh, then a single VPU select.
        return jnp.where(is_tanh_gate, jnp.tanh(gates), jax.nn.sigmoid(gates))

    def cell_update(act, c):
        i_g = act[:, 0 * H:1 * H]
        f_g = act[:, 1 * H:2 * H]
        g_g = act[:, 2 * H:3 * H]
        o_g = act[:, 3 * H:4 * H]
        c_new = f_g * c + i_g * g_g
        h_new = o_g * jnp.tanh(c_new)
        return h_new, c_new

    zeros = jnp.zeros((B, H), jnp.float32)

    # ---- Layer 0: hoisted input projection for ALL timesteps (one MXU matmul).
    g_sc[...] = (
        jnp.dot(x_ref[...], wih0_ref[...], preferred_element_type=jnp.float32)
        + b0_ref[...]
    )

    def step0(t, carry):
        h, c = carry
        row = t * B
        gates = g_sc[pl.ds(row, B), :] + jnp.dot(
            h, whh0_ref[...], preferred_element_type=jnp.float32)
        h_new, c_new = cell_update(activate(gates), c)
        y0_sc[pl.ds(row, B), :] = h_new      # keep layer-0 sequence in VMEM only
        return h_new, c_new

    h0, _ = jax.lax.fori_loop(0, T, step0, (zeros, zeros), unroll=True)

    # ---- Layer 1: hoisted input projection on layer-0's full output sequence.
    g_sc[...] = (
        jnp.dot(y0_sc[...], wih1_ref[...], preferred_element_type=jnp.float32)
        + b1_ref[...]
    )

    def step1(t, carry):
        h, c = carry
        row = t * B
        gates = g_sc[pl.ds(row, B), :] + jnp.dot(
            h, whh1_ref[...], preferred_element_type=jnp.float32)
        return cell_update(activate(gates), c)

    h1, _ = jax.lax.fori_loop(0, T, step1, (zeros, zeros), unroll=True)

    # ---- Linear epilogue: (B, 2H) . (2H,) as VPU multiply + lane reduction.
    hcat = jnp.concatenate([h0, h1], axis=1)                    # (B, 2H)
    logits = jnp.sum(hcat * wlin_ref[...], axis=1, keepdims=True) + blin_ref[...]
    out_ref[...] = logits.astype(out_ref.dtype)


def net_forward(tokens, params):
    """tokens: (B, T) int32. Returns (B,) float32 logits."""
    B, T = tokens.shape
    emb = params["emb"]
    E = emb.shape[1]
    wih0, whh0, b0 = params["lstm0"]
    wih1, whh1, b1 = params["lstm1"]
    H = whh0.shape[0]

    # Pad batch to a full sublane group of 8. Pad rows use token 0 (padding_idx=0
    # => zero embeddings); results for pad rows are discarded below.
    Bp = ((B + 7) // 8) * 8
    tokens_p = jnp.pad(tokens, ((0, Bp - B), (0, 0)))

    x = jnp.take(emb, tokens_p, axis=0)                     # (Bp, T, E)
    x_tm = jnp.transpose(x, (1, 0, 2)).reshape(T * Bp, E)   # time-major flatten

    out = pl.pallas_call(
        _fused_net_kernel,
        out_shape=jax.ShapeDtypeStruct((Bp, 1), jnp.float32),
        grid=(1,),
        in_specs=[
            pl.BlockSpec((T * Bp, E), lambda i: (0, 0)),
            pl.BlockSpec((E, 4 * H), lambda i: (0, 0)),
            pl.BlockSpec((H, 4 * H), lambda i: (0, 0)),
            pl.BlockSpec((1, 4 * H), lambda i: (0, 0)),
            pl.BlockSpec((H, 4 * H), lambda i: (0, 0)),
            pl.BlockSpec((H, 4 * H), lambda i: (0, 0)),
            pl.BlockSpec((1, 4 * H), lambda i: (0, 0)),
            pl.BlockSpec((1, 2 * H), lambda i: (0, 0)),
            pl.BlockSpec((1, 1), lambda i: (0, 0)),
        ],
        out_specs=pl.BlockSpec((Bp, 1), lambda i: (0, 0)),
        scratch_shapes=[
            pltpu.VMEM((T * Bp, 4 * H), jnp.float32),   # gate pre-activations (reused per layer)
            pltpu.VMEM((T * Bp, H), jnp.float32),       # layer-0 output sequence
        ],
        compiler_params=pltpu.CompilerParams(
            dimension_semantics=("arbitrary",),
        ),
    )(x_tm, wih0, whh0, b0, wih1, whh1, b1, params["lin_w"], params["lin_b"])

    return out[:B, 0]


# ----------------------------------------------------------------------------
# Pure-JAX reference (lax.scan LSTM) for a correctness check.
# ----------------------------------------------------------------------------
def _lstm_layer_ref(x_seq, wih_t, whh_t, bias):
    H = whh_t.shape[0]
    B = x_seq.shape[1]

    def step(carry, x_t):
        h, c = carry
        g = x_t @ wih_t + h @ whh_t + bias
        i = jax.nn.sigmoid(g[:, :H])
        f = jax.nn.sigmoid(g[:, H:2 * H])
        gg = jnp.tanh(g[:, 2 * H:3 * H])
        o = jax.nn.sigmoid(g[:, 3 * H:])
        c = f * c + i * gg
        h = o * jnp.tanh(c)
        return (h, c), h

    init = (jnp.zeros((B, H), jnp.float32), jnp.zeros((B, H), jnp.float32))
    _, ys = jax.lax.scan(step, init, x_seq)
    return ys


def net_forward_ref(tokens, params):
    x = jnp.take(params["emb"], tokens, axis=0)
    x = jnp.transpose(x, (1, 0, 2))
    y0 = _lstm_layer_ref(x, *params["lstm0"])
    y1 = _lstm_layer_ref(y0, *params["lstm1"])
    hcat = jnp.concatenate([y0[-1], y1[-1]], axis=1)
    return jnp.squeeze(hcat @ params["lin_w"].T + params["lin_b"])


# ----------------------------------------------------------------------------
# Deterministic parameter construction (PyTorch-style shapes & init ranges).
# ----------------------------------------------------------------------------
def make_params(key, vocab, emb_dim, hidden):
    ks = jax.random.split(key, 12)
    E, H = emb_dim, hidden
    bound = 1.0 / (H ** 0.5)

    def u(k, shape):
        return jax.random.uniform(k, shape, jnp.float32, -bound, bound)

    # Embedding(vocab, E, padding_idx=0): N(0,1) init, row 0 zeroed.
    emb = jax.random.normal(ks[0], (vocab, E), jnp.float32).at[0].set(0.0)

    def lstm_layer_params(k0, k1, k2, k3, in_dim):
        w_ih = u(k0, (4 * H, in_dim))            # PyTorch weight_ih_l*
        w_hh = u(k1, (4 * H, H))                 # PyTorch weight_hh_l*
        b_ih = u(k2, (4 * H,))
        b_hh = u(k3, (4 * H,))
        # kernel wants transposed weights + combined bias as (1, 4H)
        return (w_ih.T, w_hh.T, (b_ih + b_hh).reshape(1, 4 * H))

    lstm0 = lstm_layer_params(ks[1], ks[2], ks[3], ks[4], E)
    lstm1 = lstm_layer_params(ks[5], ks[6], ks[7], ks[8], H)

    lin_bound = 1.0 / ((2 * H) ** 0.5)
    lin_w = jax.random.uniform(ks[9], (1, 2 * H), jnp.float32, -lin_bound, lin_bound)
    lin_b = jax.random.uniform(ks[10], (1, 1), jnp.float32, -lin_bound, lin_bound)

    return {
        "emb": emb,
        "lstm0": lstm0,
        "lstm1": lstm1,
        "lin_w": lin_w,          # (1, 2H)  (PyTorch Linear weight layout)
        "lin_b": lin_b,          # (1, 1)
    }


if __name__ == "__main__":
    # Small shapes consistent with the module: batch=2, seq=8, vocab=64,
    # embedding_dim=32, hidden_size=32, num_layers=2, unidirectional.
    B, T, V, E, H = 2, 8, 64, 32, 32

    key = jax.random.PRNGKey(0)
    pkey, dkey = jax.random.split(key)
    params = make_params(pkey, V, E, H)
    tokens = jax.random.randint(dkey, (B, T), 0, V, dtype=jnp.int32)

    fwd = jax.jit(net_forward)
    out = jax.block_until_ready(fwd(tokens, params))

    ref = jax.block_until_ready(net_forward_ref(tokens, params))
    assert out.shape == (B,), out.shape
    assert jnp.allclose(out, ref, rtol=1e-3, atol=1e-3), (out, ref)

    print("KERNEL_OK")
</pallas_src>

<mosaic_0001>
module attributes {stable_mosaic.version = 11 : i64} {
  func.func @_fused_net_kernel(%arg0: i32, %arg1: memref<64x32xf32, #tpu.memory_space<vmem>>, %arg2: memref<32x128xf32, #tpu.memory_space<vmem>>, %arg3: memref<32x128xf32, #tpu.memory_space<vmem>>, %arg4: memref<1x128xf32, #tpu.memory_space<vmem>>, %arg5: memref<32x128xf32, #tpu.memory_space<vmem>>, %arg6: memref<32x128xf32, #tpu.memory_space<vmem>>, %arg7: memref<1x128xf32, #tpu.memory_space<vmem>>, %arg8: memref<1x64xf32, #tpu.memory_space<vmem>>, %arg9: memref<1x1xf32, #tpu.memory_space<vmem>>, %arg10: memref<8x1xf32, #tpu.memory_space<vmem>>, %arg11: memref<64x128xf32, #tpu.memory_space<vmem>>, %arg12: memref<64x32xf32, #tpu.memory_space<vmem>>) attributes {dimension_semantics = [#tpu.dimension_semantics<arbitrary>], iteration_bounds = array<i64: 1>, scalar_prefetch = 0 : i64, scratch_operands = 2 : i64, tpu.core_type = #tpu.core_type<tc>, window_params = [{pipeline_mode = #tpu.pipeline_mode<synchronous>, transform_indices = @transform_0, window_bounds = array<i64: 64, 32>}, {pipeline_mode = #tpu.pipeline_mode<synchronous>, transform_indices = @transform_1, window_bounds = array<i64: 32, 128>}, {pipeline_mode = #tpu.pipeline_mode<synchronous>, transform_indices = @transform_2, window_bounds = array<i64: 32, 128>}, {pipeline_mode = #tpu.pipeline_mode<synchronous>, transform_indices = @transform_3, window_bounds = array<i64: 1, 128>}, {pipeline_mode = #tpu.pipeline_mode<synchronous>, transform_indices = @transform_4, window_bounds = array<i64: 32, 128>}, {pipeline_mode = #tpu.pipeline_mode<synchronous>, transform_indices = @transform_5, window_bounds = array<i64: 32, 128>}, {pipeline_mode = #tpu.pipeline_mode<synchronous>, transform_indices = @transform_6, window_bounds = array<i64: 1, 128>}, {pipeline_mode = #tpu.pipeline_mode<synchronous>, transform_indices = @transform_7, window_bounds = array<i64: 1, 64>}, {pipeline_mode = #tpu.pipeline_mode<synchronous>, transform_indices = @transform_8, window_bounds = array<i64: 1, 1>}, {pipeline_mode = #tpu.pipeline_mode<synchronous>, transform_indices = @transform_9, window_bounds = array<i64: 8, 1>}]} {
    %0 = tpu.iota {dimensions = array<i32: 1>} : vector<8x128xi32>
    %c64_i32 = arith.constant 64 : i32
    %1 = vector.broadcast %c64_i32 : i32 to vector<8x128xi32>
    %2 = arith.cmpi sge, %0, %1 : vector<8x128xi32>
    %c96_i32 = arith.constant 96 : i32
    %3 = vector.broadcast %c96_i32 : i32 to vector<8x128xi32>
    %4 = arith.cmpi slt, %0, %3 : vector<8x128xi32>
    %5 = arith.andi %2, %4 : vector<8x128xi1>
    %cst = arith.constant 0.000000e+00 : f32
    %6 = vector.broadcast %cst : f32 to vector<8x32xf32>
    %c0 = arith.constant 0 : index
    %c0_0 = arith.constant 0 : index
    %7 = vector.load %arg1[%c0, %c0_0] : memref<64x32xf32, #tpu.memory_space<vmem>>, vector<64x32xf32>
    %c0_1 = arith.constant 0 : index
    %c0_2 = arith.constant 0 : index
    %8 = vector.load %arg2[%c0_1, %c0_2] : memref<32x128xf32, #tpu.memory_space<vmem>>, vector<32x128xf32>
    %cst_3 = arith.constant dense<0.000000e+00> : vector<64x128xf32>
    %9 = tpu.matmul %7, %8, %cst_3 {dimension_numbers = #tpu.dot_dimension_numbers<[1], [0], [0], [1], [0, 0, 1, 1], [], []>} : vector<64x32xf32>, vector<32x128xf32>, vector<64x128xf32> -> vector<64x128xf32>
    %c0_4 = arith.constant 0 : index
    %c0_5 = arith.constant 0 : index
    %10 = vector.load %arg4[%c0_4, %c0_5] : memref<1x128xf32, #tpu.memory_space<vmem>>, vector<1x128xf32>
    %11 = vector.broadcast %10 : vector<1x128xf32> to vector<64x128xf32>
    %12 = arith.addf %9, %11 : vector<64x128xf32>
    %c0_6 = arith.constant 0 : index
    %c0_7 = arith.constant 0 : index
    %13 = vector.load %arg11[%c0_6, %c0_7] : memref<64x128xf32, #tpu.memory_space<vmem>>, vector<64x128xf32>
    tpu.vector_store %arg11[%c0_6, %c0_7], %12 {strides = array<i32>} : memref<64x128xf32, #tpu.memory_space<vmem>>, vector<64x128xf32>,
    %c0_i32 = arith.constant 0 : i32
    %c8_i32 = arith.constant 8 : i32
    %14 = arith.muli %c0_i32, %c8_i32 : i32
    %15 = arith.index_cast %14 : i32 to index
    %c0_8 = arith.constant 0 : index
    %16 = vector.load %arg11[%15, %c0_8] : memref<64x128xf32, #tpu.memory_space<vmem>>, vector<8x128xf32>
    %c0_9 = arith.constant 0 : index
    %c0_10 = arith.constant 0 : index
    %17 = vector.load %arg3[%c0_9, %c0_10] : memref<32x128xf32, #tpu.memory_space<vmem>>, vector<32x128xf32>
    %cst_11 = arith.constant dense<0.000000e+00> : vector<8x128xf32>
    %18 = tpu.matmul %6, %17, %cst_11 {dimension_numbers = #tpu.dot_dimension_numbers<[1], [0], [0], [1], [0, 0, 1, 1], [], []>} : vector<8x32xf32>, vector<32x128xf32>, vector<8x128xf32> -> vector<8x128xf32>
    %19 = arith.addf %16, %18 : vector<8x128xf32>
    %20 = math.tanh %19 : vector<8x128xf32>
    %21 = arith.negf %19 : vector<8x128xf32>
    %22 = math.exp %21 : vector<8x128xf32>
    %cst_12 = arith.constant 1.000000e+00 : f32
    %23 = vector.broadcast %cst_12 : f32 to vector<8x128xf32>
    %24 = arith.addf %23, %22 : vector<8x128xf32>
    %25 = arith.divf %23, %24 : vector<8x128xf32>
    %26 = arith.select %5, %20, %25 : vector<8x128xi1>, vector<8x128xf32>
    %27 = vector.extract_strided_slice %26 {offsets = [0, 0], sizes = [8, 32], strides = [1, 1]} : vector<8x128xf32> to vector<8x32xf32>
    %28 = vector.extract_strided_slice %26 {offsets = [0, 32], sizes = [8, 32], strides = [1, 1]} : vector<8x128xf32> to vector<8x32xf32>
    %29 = vector.extract_strided_slice %26 {offsets = [0, 64], sizes = [8, 32], strides = [1, 1]} : vector<8x128xf32> to vector<8x32xf32>
    %30 = vector.extract_strided_slice %26 {offsets = [0, 96], sizes = [8, 32], strides = [1, 1]} : vector<8x128xf32> to vector<8x32xf32>
    %31 = arith.mulf %28, %6 : vector<8x32xf32>
    %32 = arith.mulf %27, %29 : vector<8x32xf32>
    %33 = arith.addf %31, %32 : vector<8x32xf32>
    %34 = math.tanh %33 : vector<8x32xf32>
    %35 = arith.mulf %30, %34 : vector<8x32xf32>
    %36 = arith.index_cast %14 : i32 to index
    %c0_13 = arith.constant 0 : index
    %37 = vector.load %arg12[%36, %c0_13] : memref<64x32xf32, #tpu.memory_space<vmem>>, vector<8x32xf32>
    tpu.vector_store %arg12[%36, %c0_13], %35 {strides = array<i32>} : memref<64x32xf32, #tpu.memory_space<vmem>>, vector<8x32xf32>,
    %c1_i32 = arith.constant 1 : i32
    %c8_i32_14 = arith.constant 8 : i32
    %38 = arith.muli %c1_i32, %c8_i32_14 : i32
    %39 = arith.index_cast %38 : i32 to index
    %c0_15 = arith.constant 0 : index
    %40 = vector.load %arg11[%39, %c0_15] : memref<64x128xf32, #tpu.memory_space<vmem>>, vector<8x128xf32>
    %c0_16 = arith.constant 0 : index
    %c0_17 = arith.constant 0 : index
    %41 = vector.load %arg3[%c0_16, %c0_17] : memref<32x128xf32, #tpu.memory_space<vmem>>, vector<32x128xf32>
    %cst_18 = arith.constant dense<0.000000e+00> : vector<8x128xf32>
    %42 = tpu.matmul %35, %41, %cst_18 {dimension_numbers = #tpu.dot_dimension_numbers<[1], [0], [0], [1], [0, 0, 1, 1], [], []>} : vector<8x32xf32>, vector<32x128xf32>, vector<8x128xf32> -> vector<8x128xf32>
    %43 = arith.addf %40, %42 : vector<8x128xf32>
    %44 = math.tanh %43 : vector<8x128xf32>
    %45 = arith.negf %43 : vector<8x128xf32>
    %46 = math.exp %45 : vector<8x128xf32>
    %cst_19 = arith.constant 1.000000e+00 : f32
    %47 = vector.broadcast %cst_19 : f32 to vector<8x128xf32>
    %48 = arith.addf %47, %46 : vector<8x128xf32>
    %49 = arith.divf %47, %48 : vector<8x128xf32>
    %50 = arith.select %5, %44, %49 : vector<8x128xi1>, vector<8x128xf32>
    %51 = vector.extract_strided_slice %50 {offsets = [0, 0], sizes = [8, 32], strides = [1, 1]} : vector<8x128xf32> to vector<8x32xf32>
    %52 = vector.extract_strided_slice %50 {offsets = [0, 32], sizes = [8, 32], strides = [1, 1]} : vector<8x128xf32> to vector<8x32xf32>
    %53 = vector.extract_strided_slice %50 {offsets = [0, 64], sizes = [8, 32], strides = [1, 1]} : vector<8x128xf32> to vector<8x32xf32>
    %54 = vector.extract_strided_slice %50 {offsets = [0, 96], sizes = [8, 32], strides = [1, 1]} : vector<8x128xf32> to vector<8x32xf32>
    %55 = arith.mulf %52, %33 : vector<8x32xf32>
    %56 = arith.mulf %51, %53 : vector<8x32xf32>
    %57 = arith.addf %55, %56 : vector<8x32xf32>
    %58 = math.tanh %57 : vector<8x32xf32>
    %59 = arith.mulf %54, %58 : vector<8x32xf32>
    %60 = arith.index_cast %38 : i32 to index
    %c0_20 = arith.constant 0 : index
    %61 = vector.load %arg12[%60, %c0_20] : memref<64x32xf32, #tpu.memory_space<vmem>>, vector<8x32xf32>
    tpu.vector_store %arg12[%60, %c0_20], %59 {strides = array<i32>} : memref<64x32xf32, #tpu.memory_space<vmem>>, vector<8x32xf32>,
    %c2_i32 = arith.constant 2 : i32
    %c8_i32_21 = arith.constant 8 : i32
    %62 = arith.muli %c2_i32, %c8_i32_21 : i32
    %63 = arith.index_cast %62 : i32 to index
    %c0_22 = arith.constant 0 : index
    %64 = vector.load %arg11[%63, %c0_22] : memref<64x128xf32, #tpu.memory_space<vmem>>, vector<8x128xf32>
    %c0_23 = arith.constant 0 : index
    %c0_24 = arith.constant 0 : index
    %65 = vector.load %arg3[%c0_23, %c0_24] : memref<32x128xf32, #tpu.memory_space<vmem>>, vector<32x128xf32>
    %cst_25 = arith.constant dense<0.000000e+00> : vector<8x128xf32>
    %66 = tpu.matmul %59, %65, %cst_25 {dimension_numbers = #tpu.dot_dimension_numbers<[1], [0], [0], [1], [0, 0, 1, 1], [], []>} : vector<8x32xf32>, vector<32x128xf32>, vector<8x128xf32> -> vector<8x128xf32>
    %67 = arith.addf %64, %66 : vector<8x128xf32>
    %68 = math.tanh %67 : vector<8x128xf32>
    %69 = arith.negf %67 : vector<8x128xf32>
    %70 = math.exp %69 : vector<8x128xf32>
    %cst_26 = arith.constant 1.000000e+00 : f32
    %71 = vector.broadcast %cst_26 : f32 to vector<8x128xf32>
    %72 = arith.addf %71, %70 : vector<8x128xf32>
    %73 = arith.divf %71, %72 : vector<8x128xf32>
    %74 = arith.select %5, %68, %73 : vector<8x128xi1>, vector<8x128xf32>
    %75 = vector.extract_strided_slice %74 {offsets = [0, 0], sizes = [8, 32], strides = [1, 1]} : vector<8x128xf32> to vector<8x32xf32>
    %76 = vector.extract_strided_slice %74 {offsets = [0, 32], sizes = [8, 32], strides = [1, 1]} : vector<8x128xf32> to vector<8x32xf32>
    %77 = vector.extract_strided_slice %74 {offsets = [0, 64], sizes = [8, 32], strides = [1, 1]} : vector<8x128xf32> to vector<8x32xf32>
    %78 = vector.extract_strided_slice %74 {offsets = [0, 96], sizes = [8, 32], strides = [1, 1]} : vector<8x128xf32> to vector<8x32xf32>
    %79 = arith.mulf %76, %57 : vector<8x32xf32>
    %80 = arith.mulf %75, %77 : vector<8x32xf32>
    %81 = arith.addf %79, %80 : vector<8x32xf32>
    %82 = math.tanh %81 : vector<8x32xf32>
    %83 = arith.mulf %78, %82 : vector<8x32xf32>
    %84 = arith.index_cast %62 : i32 to index
    %c0_27 = arith.constant 0 : index
    %85 = vector.load %arg12[%84, %c0_27] : memref<64x32xf32, #tpu.memory_space<vmem>>, vector<8x32xf32>
    tpu.vector_store %arg12[%84, %c0_27], %83 {strides = array<i32>} : memref<64x32xf32, #tpu.memory_space<vmem>>, vector<8x32xf32>,
    %c3_i32 = arith.constant 3 : i32
    %c8_i32_28 = arith.constant 8 : i32
    %86 = arith.muli %c3_i32, %c8_i32_28 : i32
    %87 = arith.index_cast %86 : i32 to index
    %c0_29 = arith.constant 0 : index
    %88 = vector.load %arg11[%87, %c0_29] : memref<64x128xf32, #tpu.memory_space<vmem>>, vector<8x128xf32>
    %c0_30 = arith.constant 0 : index
    %c0_31 = arith.constant 0 : index
    %89 = vector.load %arg3[%c0_30, %c0_31] : memref<32x128xf32, #tpu.memory_space<vmem>>, vector<32x128xf32>
    %cst_32 = arith.constant dense<0.000000e+00> : vector<8x128xf32>
    %90 = tpu.matmul %83, %89, %cst_32 {dimension_numbers = #tpu.dot_dimension_numbers<[1], [0], [0], [1], [0, 0, 1, 1], [], []>} : vector<8x32xf32>, vector<32x128xf32>, vector<8x128xf32> -> vector<8x128xf32>
    %91 = arith.addf %88, %90 : vector<8x128xf32>
    %92 = math.tanh %91 : vector<8x128xf32>
    %93 = arith.negf %91 : vector<8x128xf32>
    %94 = math.exp %93 : vector<8x128xf32>
    %cst_33 = arith.constant 1.000000e+00 : f32
    %95 = vector.broadcast %cst_33 : f32 to vector<8x128xf32>
    %96 = arith.addf %95, %94 : vector<8x128xf32>
    %97 = arith.divf %95, %96 : vector<8x128xf32>
    %98 = arith.select %5, %92, %97 : vector<8x128xi1>, vector<8x128xf32>
    %99 = vector.extract_strided_slice %98 {offsets = [0, 0], sizes = [8, 32], strides = [1, 1]} : vector<8x128xf32> to vector<8x32xf32>
    %100 = vector.extract_strided_slice %98 {offsets = [0, 32], sizes = [8, 32], strides = [1, 1]} : vector<8x128xf32> to vector<8x32xf32>
    %101 = vector.extract_strided_slice %98 {offsets = [0, 64], sizes = [8, 32], strides = [1, 1]} : vector<8x128xf32> to vector<8x32xf32>
    %102 = vector.extract_strided_slice %98 {offsets = [0, 96], sizes = [8, 32], strides = [1, 1]} : vector<8x128xf32> to vector<8x32xf32>
    %103 = arith.mulf %100, %81 : vector<8x32xf32>
    %104 = arith.mulf %99, %101 : vector<8x32xf32>
    %105 = arith.addf %103, %104 : vector<8x32xf32>
    %106 = math.tanh %105 : vector<8x32xf32>
    %107 = arith.mulf %102, %106 : vector<8x32xf32>
    %108 = arith.index_cast %86 : i32 to index
    %c0_34 = arith.constant 0 : index
    %109 = vector.load %arg12[%108, %c0_34] : memref<64x32xf32, #tpu.memory_space<vmem>>, vector<8x32xf32>
    tpu.vector_store %arg12[%108, %c0_34], %107 {strides = array<i32>} : memref<64x32xf32, #tpu.memory_space<vmem>>, vector<8x32xf32>,
    %c4_i32 = arith.constant 4 : i32
    %c8_i32_35 = arith.constant 8 : i32
    %110 = arith.muli %c4_i32, %c8_i32_35 : i32
    %111 = arith.index_cast %110 : i32 to index
    %c0_36 = arith.constant 0 : index
    %112 = vector.load %arg11[%111, %c0_36] : memref<64x128xf32, #tpu.memory_space<vmem>>, vector<8x128xf32>
    %c0_37 = arith.constant 0 : index
    %c0_38 = arith.constant 0 : index
    %113 = vector.load %arg3[%c0_37, %c0_38] : memref<32x128xf32, #tpu.memory_space<vmem>>, vector<32x128xf32>
    %cst_39 = arith.constant dense<0.000000e+00> : vector<8x128xf32>
    %114 = tpu.matmul %107, %113, %cst_39 {dimension_numbers = #tpu.dot_dimension_numbers<[1], [0], [0], [1], [0, 0, 1, 1], [], []>} : vector<8x32xf32>, vector<32x128xf32>, vector<8x128xf32> -> vector<8x128xf32>
    %115 = arith.addf %112, %114 : vector<8x128xf32>
    %116 = math.tanh %115 : vector<8x128xf32>
    %117 = arith.negf %115 : vector<8x128xf32>
    %118 = math.exp %117 : vector<8x128xf32>
    %cst_40 = arith.constant 1.000000e+00 : f32
    %119 = vector.broadcast %cst_40 : f32 to vector<8x128xf32>
    %120 = arith.addf %119, %118 : vector<8x128xf32>
    %121 = arith.divf %119, %120 : vector<8x128xf32>
    %122 = arith.select %5, %116, %121 : vector<8x128xi1>, vector<8x128xf32>
    %123 = vector.extract_strided_slice %122 {offsets = [0, 0], sizes = [8, 32], strides = [1, 1]} : vector<8x128xf32> to vector<8x32xf32>
    %124 = vector.extract_strided_slice %122 {offsets = [0, 32], sizes = [8, 32], strides = [1, 1]} : vector<8x128xf32> to vector<8x32xf32>
    %125 = vector.extract_strided_slice %122 {offsets = [0, 64], sizes = [8, 32], strides = [1, 1]} : vector<8x128xf32> to vector<8x32xf32>
    %126 = vector.extract_strided_slice %122 {offsets = [0, 96], sizes = [8, 32], strides = [1, 1]} : vector<8x128xf32> to vector<8x32xf32>
    %127 = arith.mulf %124, %105 : vector<8x32xf32>
    %128 = arith.mulf %123, %125 : vector<8x32xf32>
    %129 = arith.addf %127, %128 : vector<8x32xf32>
    %130 = math.tanh %129 : vector<8x32xf32>
    %131 = arith.mulf %126, %130 : vector<8x32xf32>
    %132 = arith.index_cast %110 : i32 to index
    %c0_41 = arith.constant 0 : index
    %133 = vector.load %arg12[%132, %c0_41] : memref<64x32xf32, #tpu.memory_space<vmem>>, vector<8x32xf32>
    tpu.vector_store %arg12[%132, %c0_41], %131 {strides = array<i32>} : memref<64x32xf32, #tpu.memory_space<vmem>>, vector<8x32xf32>,
    %c5_i32 = arith.constant 5 : i32
    %c8_i32_42 = arith.constant 8 : i32
    %134 = arith.muli %c5_i32, %c8_i32_42 : i32
    %135 = arith.index_cast %134 : i32 to index
    %c0_43 = arith.constant 0 : index
    %136 = vector.load %arg11[%135, %c0_43] : memref<64x128xf32, #tpu.memory_space<vmem>>, vector<8x128xf32>
    %c0_44 = arith.constant 0 : index
    %c0_45 = arith.constant 0 : index
    %137 = vector.load %arg3[%c0_44, %c0_45] : memref<32x128xf32, #tpu.memory_space<vmem>>, vector<32x128xf32>
    %cst_46 = arith.constant dense<0.000000e+00> : vector<8x128xf32>
    %138 = tpu.matmul %131, %137, %cst_46 {dimension_numbers = #tpu.dot_dimension_numbers<[1], [0], [0], [1], [0, 0, 1, 1], [], []>} : vector<8x32xf32>, vector<32x128xf32>, vector<8x128xf32> -> vector<8x128xf32>
    %139 = arith.addf %136, %138 : vector<8x128xf32>
    %140 = math.tanh %139 : vector<8x128xf32>
    %141 = arith.negf %139 : vector<8x128xf32>
    %142 = math.exp %141 : vector<8x128xf32>
    %cst_47 = arith.constant 1.000000e+00 : f32
    %143 = vector.broadcast %cst_47 : f32 to vector<8x128xf32>
    %144 = arith.addf %143, %142 : vector<8x128xf32>
    %145 = arith.divf %143, %144 : vector<8x128xf32>
    %146 = arith.select %5, %140, %145 : vector<8x128xi1>, vector<8x128xf32>
    %147 = vector.extract_strided_slice %146 {offsets = [0, 0], sizes = [8, 32], strides = [1, 1]} : vector<8x128xf32> to vector<8x32xf32>
    %148 = vector.extract_strided_slice %146 {offsets = [0, 32], sizes = [8, 32], strides = [1, 1]} : vector<8x128xf32> to vector<8x32xf32>
    %149 = vector.extract_strided_slice %146 {offsets = [0, 64], sizes = [8, 32], strides = [1, 1]} : vector<8x128xf32> to vector<8x32xf32>
    %150 = vector.extract_strided_slice %146 {offsets = [0, 96], sizes = [8, 32], strides = [1, 1]} : vector<8x128xf32> to vector<8x32xf32>
    %151 = arith.mulf %148, %129 : vector<8x32xf32>
    %152 = arith.mulf %147, %149 : vector<8x32xf32>
    %153 = arith.addf %151, %152 : vector<8x32xf32>
    %154 = math.tanh %153 : vector<8x32xf32>
    %155 = arith.mulf %150, %154 : vector<8x32xf32>
    %156 = arith.index_cast %134 : i32 to index
    %c0_48 = arith.constant 0 : index
    %157 = vector.load %arg12[%156, %c0_48] : memref<64x32xf32, #tpu.memory_space<vmem>>, vector<8x32xf32>
    tpu.vector_store %arg12[%156, %c0_48], %155 {strides = array<i32>} : memref<64x32xf32, #tpu.memory_space<vmem>>, vector<8x32xf32>,
    %c6_i32 = arith.constant 6 : i32
    %c8_i32_49 = arith.constant 8 : i32
    %158 = arith.muli %c6_i32, %c8_i32_49 : i32
    %159 = arith.index_cast %158 : i32 to index
    %c0_50 = arith.constant 0 : index
    %160 = vector.load %arg11[%159, %c0_50] : memref<64x128xf32, #tpu.memory_space<vmem>>, vector<8x128xf32>
    %c0_51 = arith.constant 0 : index
    %c0_52 = arith.constant 0 : index
    %161 = vector.load %arg3[%c0_51, %c0_52] : memref<32x128xf32, #tpu.memory_space<vmem>>, vector<32x128xf32>
    %cst_53 = arith.constant dense<0.000000e+00> : vector<8x128xf32>
    %162 = tpu.matmul %155, %161, %cst_53 {dimension_numbers = #tpu.dot_dimension_numbers<[1], [0], [0], [1], [0, 0, 1, 1], [], []>} : vector<8x32xf32>, vector<32x128xf32>, vector<8x128xf32> -> vector<8x128xf32>
    %163 = arith.addf %160, %162 : vector<8x128xf32>
    %164 = math.tanh %163 : vector<8x128xf32>
    %165 = arith.negf %163 : vector<8x128xf32>
    %166 = math.exp %165 : vector<8x128xf32>
    %cst_54 = arith.constant 1.000000e+00 : f32
    %167 = vector.broadcast %cst_54 : f32 to vector<8x128xf32>
    %168 = arith.addf %167, %166 : vector<8x128xf32>
    %169 = arith.divf %167, %168 : vector<8x128xf32>
    %170 = arith.select %5, %164, %169 : vector<8x128xi1>, vector<8x128xf32>
    %171 = vector.extract_strided_slice %170 {offsets = [0, 0], sizes = [8, 32], strides = [1, 1]} : vector<8x128xf32> to vector<8x32xf32>
    %172 = vector.extract_strided_slice %170 {offsets = [0, 32], sizes = [8, 32], strides = [1, 1]} : vector<8x128xf32> to vector<8x32xf32>
    %173 = vector.extract_strided_slice %170 {offsets = [0, 64], sizes = [8, 32], strides = [1, 1]} : vector<8x128xf32> to vector<8x32xf32>
    %174 = vector.extract_strided_slice %170 {offsets = [0, 96], sizes = [8, 32], strides = [1, 1]} : vector<8x128xf32> to vector<8x32xf32>
    %175 = arith.mulf %172, %153 : vector<8x32xf32>
    %176 = arith.mulf %171, %173 : vector<8x32xf32>
    %177 = arith.addf %175, %176 : vector<8x32xf32>
    %178 = math.tanh %177 : vector<8x32xf32>
    %179 = arith.mulf %174, %178 : vector<8x32xf32>
    %180 = arith.index_cast %158 : i32 to index
    %c0_55 = arith.constant 0 : index
    %181 = vector.load %arg12[%180, %c0_55] : memref<64x32xf32, #tpu.memory_space<vmem>>, vector<8x32xf32>
    tpu.vector_store %arg12[%180, %c0_55], %179 {strides = array<i32>} : memref<64x32xf32, #tpu.memory_space<vmem>>, vector<8x32xf32>,
    %c7_i32 = arith.constant 7 : i32
    %c8_i32_56 = arith.constant 8 : i32
    %182 = arith.muli %c7_i32, %c8_i32_56 : i32
    %183 = arith.index_cast %182 : i32 to index
    %c0_57 = arith.constant 0 : index
    %184 = vector.load %arg11[%183, %c0_57] : memref<64x128xf32, #tpu.memory_space<vmem>>, vector<8x128xf32>
    %c0_58 = arith.constant 0 : index
    %c0_59 = arith.constant 0 : index
    %185 = vector.load %arg3[%c0_58, %c0_59] : memref<32x128xf32, #tpu.memory_space<vmem>>, vector<32x128xf32>
    %cst_60 = arith.constant dense<0.000000e+00> : vector<8x128xf32>
    %186 = tpu.matmul %179, %185, %cst_60 {dimension_numbers = #tpu.dot_dimension_numbers<[1], [0], [0], [1], [0, 0, 1, 1], [], []>} : vector<8x32xf32>, vector<32x128xf32>, vector<8x128xf32> -> vector<8x128xf32>
    %187 = arith.addf %184, %186 : vector<8x128xf32>
    %188 = math.tanh %187 : vector<8x128xf32>
    %189 = arith.negf %187 : vector<8x128xf32>
    %190 = math.exp %189 : vector<8x128xf32>
    %cst_61 = arith.constant 1.000000e+00 : f32
    %191 = vector.broadcast %cst_61 : f32 to vector<8x128xf32>
    %192 = arith.addf %191, %190 : vector<8x128xf32>
    %193 = arith.divf %191, %192 : vector<8x128xf32>
    %194 = arith.select %5, %188, %193 : vector<8x128xi1>, vector<8x128xf32>
    %195 = vector.extract_strided_slice %194 {offsets = [0, 0], sizes = [8, 32], strides = [1, 1]} : vector<8x128xf32> to vector<8x32xf32>
    %196 = vector.extract_strided_slice %194 {offsets = [0, 32], sizes = [8, 32], strides = [1, 1]} : vector<8x128xf32> to vector<8x32xf32>
    %197 = vector.extract_strided_slice %194 {offsets = [0, 64], sizes = [8, 32], strides = [1, 1]} : vector<8x128xf32> to vector<8x32xf32>
    %198 = vector.extract_strided_slice %194 {offsets = [0, 96], sizes = [8, 32], strides = [1, 1]} : vector<8x128xf32> to vector<8x32xf32>
    %199 = arith.mulf %196, %177 : vector<8x32xf32>
    %200 = arith.mulf %195, %197 : vector<8x32xf32>
    %201 = arith.addf %199, %200 : vector<8x32xf32>
    %202 = math.tanh %201 : vector<8x32xf32>
    %203 = arith.mulf %198, %202 : vector<8x32xf32>
    %204 = arith.index_cast %182 : i32 to index
    %c0_62 = arith.constant 0 : index
    %205 = vector.load %arg12[%204, %c0_62] : memref<64x32xf32, #tpu.memory_space<vmem>>, vector<8x32xf32>
    tpu.vector_store %arg12[%204, %c0_62], %203 {strides = array<i32>} : memref<64x32xf32, #tpu.memory_space<vmem>>, vector<8x32xf32>,
    %c8_i32_63 = arith.constant 8 : i32
    %c0_64 = arith.constant 0 : index
    %c0_65 = arith.constant 0 : index
    %206 = vector.load %arg12[%c0_64, %c0_65] : memref<64x32xf32, #tpu.memory_space<vmem>>, vector<64x32xf32>
    %c0_66 = arith.constant 0 : index
    %c0_67 = arith.constant 0 : index
    %207 = vector.load %arg5[%c0_66, %c0_67] : memref<32x128xf32, #tpu.memory_space<vmem>>, vector<32x128xf32>
    %cst_68 = arith.constant dense<0.000000e+00> : vector<64x128xf32>
    %208 = tpu.matmul %206, %207, %cst_68 {dimension_numbers = #tpu.dot_dimension_numbers<[1], [0], [0], [1], [0, 0, 1, 1], [], []>} : vector<64x32xf32>, vector<32x128xf32>, vector<64x128xf32> -> vector<64x128xf32>
    %c0_69 = arith.constant 0 : index
    %c0_70 = arith.constant 0 : index
    %209 = vector.load %arg7[%c0_69, %c0_70] : memref<1x128xf32, #tpu.memory_space<vmem>>, vector<1x128xf32>
    %210 = vector.broadcast %209 : vector<1x128xf32> to vector<64x128xf32>
    %211 = arith.addf %208, %210 : vector<64x128xf32>
    %c0_71 = arith.constant 0 : index
    %c0_72 = arith.constant 0 : index
    %212 = vector.load %arg11[%c0_71, %c0_72] : memref<64x128xf32, #tpu.memory_space<vmem>>, vector<64x128xf32>
    tpu.vector_store %arg11[%c0_71, %c0_72], %211 {strides = array<i32>} : memref<64x128xf32, #tpu.memory_space<vmem>>, vector<64x128xf32>,
    %c0_i32_73 = arith.constant 0 : i32
    %c8_i32_74 = arith.constant 8 : i32
    %213 = arith.muli %c0_i32_73, %c8_i32_74 : i32
    %214 = arith.index_cast %213 : i32 to index
    %c0_75 = arith.constant 0 : index
    %215 = vector.load %arg11[%214, %c0_75] : memref<64x128xf32, #tpu.memory_space<vmem>>, vector<8x128xf32>
    %c0_76 = arith.constant 0 : index
    %c0_77 = arith.constant 0 : index
    %216 = vector.load %arg6[%c0_76, %c0_77] : memref<32x128xf32, #tpu.memory_space<vmem>>, vector<32x128xf32>
    %cst_78 = arith.constant dense<0.000000e+00> : vector<8x128xf32>
    %217 = tpu.matmul %6, %216, %cst_78 {dimension_numbers = #tpu.dot_dimension_numbers<[1], [0], [0], [1], [0, 0, 1, 1], [], []>} : vector<8x32xf32>, vector<32x128xf32>, vector<8x128xf32> -> vector<8x128xf32>
    %218 = arith.addf %215, %217 : vector<8x128xf32>
    %219 = math.tanh %218 : vector<8x128xf32>
    %220 = arith.negf %218 : vector<8x128xf32>
    %221 = math.exp %220 : vector<8x128xf32>
    %cst_79 = arith.constant 1.000000e+00 : f32
    %222 = vector.broadcast %cst_79 : f32 to vector<8x128xf32>
    %223 = arith.addf %222, %221 : vector<8x128xf32>
    %224 = arith.divf %222, %223 : vector<8x128xf32>
    %225 = arith.select %5, %219, %224 : vector<8x128xi1>, vector<8x128xf32>
    %226 = vector.extract_strided_slice %225 {offsets = [0, 0], sizes = [8, 32], strides = [1, 1]} : vector<8x128xf32> to vector<8x32xf32>
    %227 = vector.extract_strided_slice %225 {offsets = [0, 32], sizes = [8, 32], strides = [1, 1]} : vector<8x128xf32> to vector<8x32xf32>
    %228 = vector.extract_strided_slice %225 {offsets = [0, 64], sizes = [8, 32], strides = [1, 1]} : vector<8x128xf32> to vector<8x32xf32>
    %229 = vector.extract_strided_slice %225 {offsets = [0, 96], sizes = [8, 32], strides = [1, 1]} : vector<8x128xf32> to vector<8x32xf32>
    %230 = arith.mulf %227, %6 : vector<8x32xf32>
    %231 = arith.mulf %226, %228 : vector<8x32xf32>
    %232 = arith.addf %230, %231 : vector<8x32xf32>
    %233 = math.tanh %232 : vector<8x32xf32>
    %234 = arith.mulf %229, %233 : vector<8x32xf32>
    %c1_i32_80 = arith.constant 1 : i32
    %c8_i32_81 = arith.constant 8 : i32
    %235 = arith.muli %c1_i32_80, %c8_i32_81 : i32
    %236 = arith.index_cast %235 : i32 to index
    %c0_82 = arith.constant 0 : index
    %237 = vector.load %arg11[%236, %c0_82] : memref<64x128xf32, #tpu.memory_space<vmem>>, vector<8x128xf32>
    %c0_83 = arith.constant 0 : index
    %c0_84 = arith.constant 0 : index
    %238 = vector.load %arg6[%c0_83, %c0_84] : memref<32x128xf32, #tpu.memory_space<vmem>>, vector<32x128xf32>
    %cst_85 = arith.constant dense<0.000000e+00> : vector<8x128xf32>
    %239 = tpu.matmul %234, %238, %cst_85 {dimension_numbers = #tpu.dot_dimension_numbers<[1], [0], [0], [1], [0, 0, 1, 1], [], []>} : vector<8x32xf32>, vector<32x128xf32>, vector<8x128xf32> -> vector<8x128xf32>
    %240 = arith.addf %237, %239 : vector<8x128xf32>
    %241 = math.tanh %240 : vector<8x128xf32>
    %242 = arith.negf %240 : vector<8x128xf32>
    %243 = math.exp %242 : vector<8x128xf32>
    %cst_86 = arith.constant 1.000000e+00 : f32
    %244 = vector.broadcast %cst_86 : f32 to vector<8x128xf32>
    %245 = arith.addf %244, %243 : vector<8x128xf32>
    %246 = arith.divf %244, %245 : vector<8x128xf32>
    %247 = arith.select %5, %241, %246 : vector<8x128xi1>, vector<8x128xf32>
    %248 = vector.extract_strided_slice %247 {offsets = [0, 0], sizes = [8, 32], strides = [1, 1]} : vector<8x128xf32> to vector<8x32xf32>
    %249 = vector.extract_strided_slice %247 {offsets = [0, 32], sizes = [8, 32], strides = [1, 1]} : vector<8x128xf32> to vector<8x32xf32>
    %250 = vector.extract_strided_slice %247 {offsets = [0, 64], sizes = [8, 32], strides = [1, 1]} : vector<8x128xf32> to vector<8x32xf32>
    %251 = vector.extract_strided_slice %247 {offsets = [0, 96], sizes = [8, 32], strides = [1, 1]} : vector<8x128xf32> to vector<8x32xf32>
    %252 = arith.mulf %249, %232 : vector<8x32xf32>
    %253 = arith.mulf %248, %250 : vector<8x32xf32>
    %254 = arith.addf %252, %253 : vector<8x32xf32>
    %255 = math.tanh %254 : vector<8x32xf32>
    %256 = arith.mulf %251, %255 : vector<8x32xf32>
    %c2_i32_87 = arith.constant 2 : i32
    %c8_i32_88 = arith.constant 8 : i32
    %257 = arith.muli %c2_i32_87, %c8_i32_88 : i32
    %258 = arith.index_cast %257 : i32 to index
    %c0_89 = arith.constant 0 : index
    %259 = vector.load %arg11[%258, %c0_89] : memref<64x128xf32, #tpu.memory_space<vmem>>, vector<8x128xf32>
    %c0_90 = arith.constant 0 : index
    %c0_91 = arith.constant 0 : index
    %260 = vector.load %arg6[%c0_90, %c0_91] : memref<32x128xf32, #tpu.memory_space<vmem>>, vector<32x128xf32>
    %cst_92 = arith.constant dense<0.000000e+00> : vector<8x128xf32>
    %261 = tpu.matmul %256, %260, %cst_92 {dimension_numbers = #tpu.dot_dimension_numbers<[1], [0], [0], [1], [0, 0, 1, 1], [], []>} : vector<8x32xf32>, vector<32x128xf32>, vector<8x128xf32> -> vector<8x128xf32>
    %262 = arith.addf %259, %261 : vector<8x128xf32>
    %263 = math.tanh %262 : vector<8x128xf32>
    %264 = arith.negf %262 : vector<8x128xf32>
    %265 = math.exp %264 : vector<8x128xf32>
    %cst_93 = arith.constant 1.000000e+00 : f32
    %266 = vector.broadcast %cst_93 : f32 to vector<8x128xf32>
    %267 = arith.addf %266, %265 : vector<8x128xf32>
    %268 = arith.divf %266, %267 : vector<8x128xf32>
    %269 = arith.select %5, %263, %268 : vector<8x128xi1>, vector<8x128xf32>
    %270 = vector.extract_strided_slice %269 {offsets = [0, 0], sizes = [8, 32], strides = [1, 1]} : vector<8x128xf32> to vector<8x32xf32>
    %271 = vector.extract_strided_slice %269 {offsets = [0, 32], sizes = [8, 32], strides = [1, 1]} : vector<8x128xf32> to vector<8x32xf32>
    %272 = vector.extract_strided_slice %269 {offsets = [0, 64], sizes = [8, 32], strides = [1, 1]} : vector<8x128xf32> to vector<8x32xf32>
    %273 = vector.extract_strided_slice %269 {offsets = [0, 96], sizes = [8, 32], strides = [1, 1]} : vector<8x128xf32> to vector<8x32xf32>
    %274 = arith.mulf %271, %254 : vector<8x32xf32>
    %275 = arith.mulf %270, %272 : vector<8x32xf32>
    %276 = arith.addf %274, %275 : vector<8x32xf32>
    %277 = math.tanh %276 : vector<8x32xf32>
    %278 = arith.mulf %273, %277 : vector<8x32xf32>
    %c3_i32_94 = arith.constant 3 : i32
    %c8_i32_95 = arith.constant 8 : i32
    %279 = arith.muli %c3_i32_94, %c8_i32_95 : i32
    %280 = arith.index_cast %279 : i32 to index
    %c0_96 = arith.constant 0 : index
    %281 = vector.load %arg11[%280, %c0_96] : memref<64x128xf32, #tpu.memory_space<vmem>>, vector<8x128xf32>
    %c0_97 = arith.constant 0 : index
    %c0_98 = arith.constant 0 : index
    %282 = vector.load %arg6[%c0_97, %c0_98] : memref<32x128xf32, #tpu.memory_space<vmem>>, vector<32x128xf32>
    %cst_99 = arith.constant dense<0.000000e+00> : vector<8x128xf32>
    %283 = tpu.matmul %278, %282, %cst_99 {dimension_numbers = #tpu.dot_dimension_numbers<[1], [0], [0], [1], [0, 0, 1, 1], [], []>} : vector<8x32xf32>, vector<32x128xf32>, vector<8x128xf32> -> vector<8x128xf32>
    %284 = arith.addf %281, %283 : vector<8x128xf32>
    %285 = math.tanh %284 : vector<8x128xf32>
    %286 = arith.negf %284 : vector<8x128xf32>
    %287 = math.exp %286 : vector<8x128xf32>
    %cst_100 = arith.constant 1.000000e+00 : f32
    %288 = vector.broadcast %cst_100 : f32 to vector<8x128xf32>
    %289 = arith.addf %288, %287 : vector<8x128xf32>
    %290 = arith.divf %288, %289 : vector<8x128xf32>
    %291 = arith.select %5, %285, %290 : vector<8x128xi1>, vector<8x128xf32>
    %292 = vector.extract_strided_slice %291 {offsets = [0, 0], sizes = [8, 32], strides = [1, 1]} : vector<8x128xf32> to vector<8x32xf32>
    %293 = vector.extract_strided_slice %291 {offsets = [0, 32], sizes = [8, 32], strides = [1, 1]} : vector<8x128xf32> to vector<8x32xf32>
    %294 = vector.extract_strided_slice %291 {offsets = [0, 64], sizes = [8, 32], strides = [1, 1]} : vector<8x128xf32> to vector<8x32xf32>
    %295 = vector.extract_strided_slice %291 {offsets = [0, 96], sizes = [8, 32], strides = [1, 1]} : vector<8x128xf32> to vector<8x32xf32>
    %296 = arith.mulf %293, %276 : vector<8x32xf32>
    %297 = arith.mulf %292, %294 : vector<8x32xf32>
    %298 = arith.addf %296, %297 : vector<8x32xf32>
    %299 = math.tanh %298 : vector<8x32xf32>
    %300 = arith.mulf %295, %299 : vector<8x32xf32>
    %c4_i32_101 = arith.constant 4 : i32
    %c8_i32_102 = arith.constant 8 : i32
    %301 = arith.muli %c4_i32_101, %c8_i32_102 : i32
    %302 = arith.index_cast %301 : i32 to index
    %c0_103 = arith.constant 0 : index
    %303 = vector.load %arg11[%302, %c0_103] : memref<64x128xf32, #tpu.memory_space<vmem>>, vector<8x128xf32>
    %c0_104 = arith.constant 0 : index
    %c0_105 = arith.constant 0 : index
    %304 = vector.load %arg6[%c0_104, %c0_105] : memref<32x128xf32, #tpu.memory_space<vmem>>, vector<32x128xf32>
    %cst_106 = arith.constant dense<0.000000e+00> : vector<8x128xf32>
    %305 = tpu.matmul %300, %304, %cst_106 {dimension_numbers = #tpu.dot_dimension_numbers<[1], [0], [0], [1], [0, 0, 1, 1], [], []>} : vector<8x32xf32>, vector<32x128xf32>, vector<8x128xf32> -> vector<8x128xf32>
    %306 = arith.addf %303, %305 : vector<8x128xf32>
    %307 = math.tanh %306 : vector<8x128xf32>
    %308 = arith.negf %306 : vector<8x128xf32>
    %309 = math.exp %308 : vector<8x128xf32>
    %cst_107 = arith.constant 1.000000e+00 : f32
    %310 = vector.broadcast %cst_107 : f32 to vector<8x128xf32>
    %311 = arith.addf %310, %309 : vector<8x128xf32>
    %312 = arith.divf %310, %311 : vector<8x128xf32>
    %313 = arith.select %5, %307, %312 : vector<8x128xi1>, vector<8x128xf32>
    %314 = vector.extract_strided_slice %313 {offsets = [0, 0], sizes = [8, 32], strides = [1, 1]} : vector<8x128xf32> to vector<8x32xf32>
    %315 = vector.extract_strided_slice %313 {offsets = [0, 32], sizes = [8, 32], strides = [1, 1]} : vector<8x128xf32> to vector<8x32xf32>
    %316 = vector.extract_strided_slice %313 {offsets = [0, 64], sizes = [8, 32], strides = [1, 1]} : vector<8x128xf32> to vector<8x32xf32>
    %317 = vector.extract_strided_slice %313 {offsets = [0, 96], sizes = [8, 32], strides = [1, 1]} : vector<8x128xf32> to vector<8x32xf32>
    %318 = arith.mulf %315, %298 : vector<8x32xf32>
    %319 = arith.mulf %314, %316 : vector<8x32xf32>
    %320 = arith.addf %318, %319 : vector<8x32xf32>
    %321 = math.tanh %320 : vector<8x32xf32>
    %322 = arith.mulf %317, %321 : vector<8x32xf32>
    %c5_i32_108 = arith.constant 5 : i32
    %c8_i32_109 = arith.constant 8 : i32
    %323 = arith.muli %c5_i32_108, %c8_i32_109 : i32
    %324 = arith.index_cast %323 : i32 to index
    %c0_110 = arith.constant 0 : index
    %325 = vector.load %arg11[%324, %c0_110] : memref<64x128xf32, #tpu.memory_space<vmem>>, vector<8x128xf32>
    %c0_111 = arith.constant 0 : index
    %c0_112 = arith.constant 0 : index
    %326 = vector.load %arg6[%c0_111, %c0_112] : memref<32x128xf32, #tpu.memory_space<vmem>>, vector<32x128xf32>
    %cst_113 = arith.constant dense<0.000000e+00> : vector<8x128xf32>
    %327 = tpu.matmul %322, %326, %cst_113 {dimension_numbers = #tpu.dot_dimension_numbers<[1], [0], [0], [1], [0, 0, 1, 1], [], []>} : vector<8x32xf32>, vector<32x128xf32>, vector<8x128xf32> -> vector<8x128xf32>
    %328 = arith.addf %325, %327 : vector<8x128xf32>
    %329 = math.tanh %328 : vector<8x128xf32>
    %330 = arith.negf %328 : vector<8x128xf32>
    %331 = math.exp %330 : vector<8x128xf32>
    %cst_114 = arith.constant 1.000000e+00 : f32
    %332 = vector.broadcast %cst_114 : f32 to vector<8x128xf32>
    %333 = arith.addf %332, %331 : vector<8x128xf32>
    %334 = arith.divf %332, %333 : vector<8x128xf32>
    %335 = arith.select %5, %329, %334 : vector<8x128xi1>, vector<8x128xf32>
    %336 = vector.extract_strided_slice %335 {offsets = [0, 0], sizes = [8, 32], strides = [1, 1]} : vector<8x128xf32> to vector<8x32xf32>
    %337 = vector.extract_strided_slice %335 {offsets = [0, 32], sizes = [8, 32], strides = [1, 1]} : vector<8x128xf32> to vector<8x32xf32>
    %338 = vector.extract_strided_slice %335 {offsets = [0, 64], sizes = [8, 32], strides = [1, 1]} : vector<8x128xf32> to vector<8x32xf32>
    %339 = vector.extract_strided_slice %335 {offsets = [0, 96], sizes = [8, 32], strides = [1, 1]} : vector<8x128xf32> to vector<8x32xf32>
    %340 = arith.mulf %337, %320 : vector<8x32xf32>
    %341 = arith.mulf %336, %338 : vector<8x32xf32>
    %342 = arith.addf %340, %341 : vector<8x32xf32>
    %343 = math.tanh %342 : vector<8x32xf32>
    %344 = arith.mulf %339, %343 : vector<8x32xf32>
    %c6_i32_115 = arith.constant 6 : i32
    %c8_i32_116 = arith.constant 8 : i32
    %345 = arith.muli %c6_i32_115, %c8_i32_116 : i32
    %346 = arith.index_cast %345 : i32 to index
    %c0_117 = arith.constant 0 : index
    %347 = vector.load %arg11[%346, %c0_117] : memref<64x128xf32, #tpu.memory_space<vmem>>, vector<8x128xf32>
    %c0_118 = arith.constant 0 : index
    %c0_119 = arith.constant 0 : index
    %348 = vector.load %arg6[%c0_118, %c0_119] : memref<32x128xf32, #tpu.memory_space<vmem>>, vector<32x128xf32>
    %cst_120 = arith.constant dense<0.000000e+00> : vector<8x128xf32>
    %349 = tpu.matmul %344, %348, %cst_120 {dimension_numbers = #tpu.dot_dimension_numbers<[1], [0], [0], [1], [0, 0, 1, 1], [], []>} : vector<8x32xf32>, vector<32x128xf32>, vector<8x128xf32> -> vector<8x128xf32>
    %350 = arith.addf %347, %349 : vector<8x128xf32>
    %351 = math.tanh %350 : vector<8x128xf32>
    %352 = arith.negf %350 : vector<8x128xf32>
    %353 = math.exp %352 : vector<8x128xf32>
    %cst_121 = arith.constant 1.000000e+00 : f32
    %354 = vector.broadcast %cst_121 : f32 to vector<8x128xf32>
    %355 = arith.addf %354, %353 : vector<8x128xf32>
    %356 = arith.divf %354, %355 : vector<8x128xf32>
    %357 = arith.select %5, %351, %356 : vector<8x128xi1>, vector<8x128xf32>
    %358 = vector.extract_strided_slice %357 {offsets = [0, 0], sizes = [8, 32], strides = [1, 1]} : vector<8x128xf32> to vector<8x32xf32>
    %359 = vector.extract_strided_slice %357 {offsets = [0, 32], sizes = [8, 32], strides = [1, 1]} : vector<8x128xf32> to vector<8x32xf32>
    %360 = vector.extract_strided_slice %357 {offsets = [0, 64], sizes = [8, 32], strides = [1, 1]} : vector<8x128xf32> to vector<8x32xf32>
    %361 = vector.extract_strided_slice %357 {offsets = [0, 96], sizes = [8, 32], strides = [1, 1]} : vector<8x128xf32> to vector<8x32xf32>
    %362 = arith.mulf %359, %342 : vector<8x32xf32>
    %363 = arith.mulf %358, %360 : vector<8x32xf32>
    %364 = arith.addf %362, %363 : vector<8x32xf32>
    %365 = math.tanh %364 : vector<8x32xf32>
    %366 = arith.mulf %361, %365 : vector<8x32xf32>
    %c7_i32_122 = arith.constant 7 : i32
    %c8_i32_123 = arith.constant 8 : i32
    %367 = arith.muli %c7_i32_122, %c8_i32_123 : i32
    %368 = arith.index_cast %367 : i32 to index
    %c0_124 = arith.constant 0 : index
    %369 = vector.load %arg11[%368, %c0_124] : memref<64x128xf32, #tpu.memory_space<vmem>>, vector<8x128xf32>
    %c0_125 = arith.constant 0 : index
    %c0_126 = arith.constant 0 : index
    %370 = vector.load %arg6[%c0_125, %c0_126] : memref<32x128xf32, #tpu.memory_space<vmem>>, vector<32x128xf32>
    %cst_127 = arith.constant dense<0.000000e+00> : vector<8x128xf32>
    %371 = tpu.matmul %366, %370, %cst_127 {dimension_numbers = #tpu.dot_dimension_numbers<[1], [0], [0], [1], [0, 0, 1, 1], [], []>} : vector<8x32xf32>, vector<32x128xf32>, vector<8x128xf32> -> vector<8x128xf32>
    %372 = arith.addf %369, %371 : vector<8x128xf32>
    %373 = math.tanh %372 : vector<8x128xf32>
    %374 = arith.negf %372 : vector<8x128xf32>
    %375 = math.exp %374 : vector<8x128xf32>
    %cst_128 = arith.constant 1.000000e+00 : f32
    %376 = vector.broadcast %cst_128 : f32 to vector<8x128xf32>
    %377 = arith.addf %376, %375 : vector<8x128xf32>
    %378 = arith.divf %376, %377 : vector<8x128xf32>
    %379 = arith.select %5, %373, %378 : vector<8x128xi1>, vector<8x128xf32>
    %380 = vector.extract_strided_slice %379 {offsets = [0, 0], sizes = [8, 32], strides = [1, 1]} : vector<8x128xf32> to vector<8x32xf32>
    %381 = vector.extract_strided_slice %379 {offsets = [0, 32], sizes = [8, 32], strides = [1, 1]} : vector<8x128xf32> to vector<8x32xf32>
    %382 = vector.extract_strided_slice %379 {offsets = [0, 64], sizes = [8, 32], strides = [1, 1]} : vector<8x128xf32> to vector<8x32xf32>
    %383 = vector.extract_strided_slice %379 {offsets = [0, 96], sizes = [8, 32], strides = [1, 1]} : vector<8x128xf32> to vector<8x32xf32>
    %384 = arith.mulf %381, %364 : vector<8x32xf32>
    %385 = arith.mulf %380, %382 : vector<8x32xf32>
    %386 = arith.addf %384, %385 : vector<8x32xf32>
    %387 = math.tanh %386 : vector<8x32xf32>
    %388 = arith.mulf %383, %387 : vector<8x32xf32>
    %c8_i32_129 = arith.constant 8 : i32
    %389 = tpu.concatenate %203, %388 in 1 : vector<8x32xf32>, vector<8x32xf32> -> vector<8x64xf32>
    %c0_130 = arith.constant 0 : index
    %c0_131 = arith.constant 0 : index
    %390 = vector.load %arg8[%c0_130, %c0_131] : memref<1x64xf32, #tpu.memory_space<vmem>>, vector<1x64xf32>
    %391 = vector.broadcast %390 : vector<1x64xf32> to vector<8x64xf32>
    %392 = arith.mulf %389, %391 : vector<8x64xf32>
    %cst_132 = arith.constant dense<0.000000e+00> : vector<8xf32>
    %393 = vector.multi_reduction <add>, %392, %cst_132 [1] : vector<8x64xf32> to vector<8xf32>
    %394 = vector.shape_cast %393 : vector<8xf32> to vector<8x1xf32>
    %c0_133 = arith.constant 0 : index
    %c0_134 = arith.constant 0 : index
    %395 = vector.load %arg9[%c0_133, %c0_134] : memref<1x1xf32, #tpu.memory_space<vmem>>, vector<1x1xf32>
    %396 = vector.broadcast %395 : vector<1x1xf32> to vector<8x1xf32>
    %397 = arith.addf %394, %396 : vector<8x1xf32>
    %c0_135 = arith.constant 0 : index
    %c0_136 = arith.constant 0 : index
    %398 = vector.load %arg10[%c0_135, %c0_136] : memref<8x1xf32, #tpu.memory_space<vmem>>, vector<8x1xf32>
    tpu.vector_store %arg10[%c0_135, %c0_136], %397 {strides = array<i32>} : memref<8x1xf32, #tpu.memory_space<vmem>>, vector<8x1xf32>,
    return
  }
  func.func @transform_0(%arg0: i32) -> (i32, i32) {
    %c0_i32 = arith.constant 0 : i32
    %c0_i32_0 = arith.constant 0 : i32
    %c0_i32_1 = arith.constant 0 : i32
    return %c0_i32, %c0_i32_0 : i32, i32
  }
  func.func @transform_1(%arg0: i32) -> (i32, i32) {
    %c0_i32 = arith.constant 0 : i32
    %c0_i32_0 = arith.constant 0 : i32
    %c0_i32_1 = arith.constant 0 : i32
    return %c0_i32, %c0_i32_0 : i32, i32
  }
  func.func @transform_2(%arg0: i32) -> (i32, i32) {
    %c0_i32 = arith.constant 0 : i32
    %c0_i32_0 = arith.constant 0 : i32
    %c0_i32_1 = arith.constant 0 : i32
    return %c0_i32, %c0_i32_0 : i32, i32
  }
  func.func @transform_3(%arg0: i32) -> (i32, i32) {
    %c0_i32 = arith.constant 0 : i32
    %c0_i32_0 = arith.constant 0 : i32
    %c0_i32_1 = arith.constant 0 : i32
    return %c0_i32, %c0_i32_0 : i32, i32
  }
  func.func @transform_4(%arg0: i32) -> (i32, i32) {
    %c0_i32 = arith.constant 0 : i32
    %c0_i32_0 = arith.constant 0 : i32
    %c0_i32_1 = arith.constant 0 : i32
    return %c0_i32, %c0_i32_0 : i32, i32
  }
  func.func @transform_5(%arg0: i32) -> (i32, i32) {
    %c0_i32 = arith.constant 0 : i32
    %c0_i32_0 = arith.constant 0 : i32
    %c0_i32_1 = arith.constant 0 : i32
    return %c0_i32, %c0_i32_0 : i32, i32
  }
  func.func @transform_6(%arg0: i32) -> (i32, i32) {
    %c0_i32 = arith.constant 0 : i32
    %c0_i32_0 = arith.constant 0 : i32
    %c0_i32_1 = arith.constant 0 : i32
    return %c0_i32, %c0_i32_0 : i32, i32
  }
  func.func @transform_7(%arg0: i32) -> (i32, i32) {
    %c0_i32 = arith.constant 0 : i32
    %c0_i32_0 = arith.constant 0 : i32
    %c0_i32_1 = arith.constant 0 : i32
    return %c0_i32, %c0_i32_0 : i32, i32
  }
  func.func @transform_8(%arg0: i32) -> (i32, i32) {
    %c0_i32 = arith.constant 0 : i32
    %c0_i32_0 = arith.constant 0 : i32
    %c0_i32_1 = arith.constant 0 : i32
    return %c0_i32, %c0_i32_0 : i32, i32
  }
  func.func @transform_9(%arg0: i32) -> (i32, i32) {
    %c0_i32 = arith.constant 0 : i32
    %c0_i32_0 = arith.constant 0 : i32
    %c0_i32_1 = arith.constant 0 : i32
    return %c0_i32, %c0_i32_0 : i32, i32
  }
}

</mosaic_0001>

<llo_original>
// kernel: net_forward.1
$region0: #{net_forward.1}
  #allocation0 [shape = 'u32[]', space=smem, size = 0x4, offset = 0x4, fixed_abs, tag = 'smem constant byte address 0x4 - core index']
  #allocation1 [shape = 'u32[144,128]{1,0:T(1,128)}', space=vmem, size = 0x12000, scoped, tag = 'internal scratch']
  #allocation2 [shape = 'f32[64,128]{1,0:T(8,128)}', space=vmem, size = 0x8000, scoped, tag = 'scratch operand']
  #allocation3 [shape = 'f32[64,32]{1,0:T(8,128)}', space=vmem, size = 0x8000, scoped, tag = 'scratch operand']
  #allocation4 [shape = 'f32[1,1]{1,0:T(1,128)S(1)}', space=vmem, size = 0x200, scoped, tag = 'scoped memory for net_forward.1']
  %s0 = inlined_call_operand.vmem [shape: f32[64,32], index: 0, kind: input, shape index: {}]
  %s1 = inlined_call_operand.vmem [shape: f32[32,128], index: 1, kind: input, shape index: {}]
  %s2 = inlined_call_operand.vmem [shape: f32[32,128], index: 2, kind: input, shape index: {}]
  %s3 = inlined_call_operand.vmem [shape: f32[1,128], index: 3, kind: input, shape index: {}]
  %s4 = inlined_call_operand.vmem [shape: f32[32,128], index: 4, kind: input, shape index: {}]
  %s5 = inlined_call_operand.vmem [shape: f32[32,128], index: 5, kind: input, shape index: {}]
  %s6 = inlined_call_operand.vmem [shape: f32[1,128], index: 6, kind: input, shape index: {}]
  %s7 = inlined_call_operand.vmem [shape: f32[1,64], index: 7, kind: input, shape index: {}]
  %s8 = inlined_call_operand.<no memory space> [shape: f32[1,1], index: 8, kind: input, shape index: {}]
  %s9 = inlined_call_operand.vmem [shape: f32[8,1], index: 9, kind: output, shape index: {}]
  %s10 = sld [smem:[#allocation0]]
  $region46: #{net_forward.1} parent=0
    _
  %s12 = ssub.s32 1, %s10
  %s13 = scalar_select 0, %s12, %s10
  %v14 = vstv %s8
  %15 = vst [vmem:[#allocation4] sm:$0x1] %v14
  // Predicated region
  $region2: #{net_forward.1} parent=0 // pred_check
    _
  $region3: #{net_forward.1} parent=0 // pred_check_branch
    %17 = sbr.rel (0) target = $region5
  $region4: #{net_forward.1} parent=0 // pred_region
    _
  $region5: #{net_forward.1} parent=0 // pred_fallthru
    _
  // Predicated region
  $region6: #{net_forward.1} parent=0 // pred_check
    _
  $region7: #{net_forward.1} parent=0 // pred_check_branch
    %19 = sbr.rel (0) target = $region9
  $region8: #{net_forward.1} parent=0 // pred_region
    _
  $region9: #{net_forward.1} parent=0 // pred_fallthru
    _
  // Predicated region
  $region10: #{net_forward.1} parent=0 // pred_check
    _
  $region11: #{net_forward.1} parent=0 // pred_check_branch
    %21 = sbr.rel (0) target = $region13
  $region12: #{net_forward.1} parent=0 // pred_region
    _
  $region13: #{net_forward.1} parent=0 // pred_fallthru
    _
  // Predicated region
  $region14: #{net_forward.1} parent=0 // pred_check
    _
  $region15: #{net_forward.1} parent=0 // pred_check_branch
    %23 = sbr.rel (0) target = $region17
  $region16: #{net_forward.1} parent=0 // pred_region
    _
  $region17: #{net_forward.1} parent=0 // pred_fallthru
    _
  // Predicated region
  $region18: #{net_forward.1} parent=0 // pred_check
    _
  $region19: #{net_forward.1} parent=0 // pred_check_branch
    %25 = sbr.rel (0) target = $region21
  $region20: #{net_forward.1} parent=0 // pred_region
    _
  $region21: #{net_forward.1} parent=0 // pred_fallthru
    _
  // Predicated region
  $region22: #{net_forward.1} parent=0 // pred_check
    _
  $region23: #{net_forward.1} parent=0 // pred_check_branch
    %27 = sbr.rel (0) target = $region25
  $region24: #{net_forward.1} parent=0 // pred_region
    _
  $region25: #{net_forward.1} parent=0 // pred_fallthru
    _
  // Predicated region
  $region26: #{net_forward.1} parent=0 // pred_check
    _
  $region27: #{net_forward.1} parent=0 // pred_check_branch
    %29 = sbr.rel (0) target = $region29
  $region28: #{net_forward.1} parent=0 // pred_region
    _
  $region29: #{net_forward.1} parent=0 // pred_fallthru
    _
  // Predicated region
  $region30: #{net_forward.1} parent=0 // pred_check
    _
  $region31: #{net_forward.1} parent=0 // pred_check_branch
    %31 = sbr.rel (0) target = $region33
  $region32: #{net_forward.1} parent=0 // pred_region
    _
  $region33: #{net_forward.1} parent=0 // pred_fallthru
    _
  // Predicated region
  $region34: #{net_forward.1} parent=0 // pred_check
    _
  $region35: #{net_forward.1} parent=0 // pred_check_branch
    %33 = sbr.rel (0) target = $region37
  $region36: #{net_forward.1} parent=0 // pred_region
    _
  $region37: #{net_forward.1} parent=0 // pred_fallthru
    _
  %v34 = vlaneseq
  %v35 = vand.u32 %v34, 127
  %vm36 = vcmp.ge.s32.totalorder %v35, 64
  %vm37 = vcmp.lt.s32.totalorder %v35, 96
  %vm38 = vmand %vm36, %vm37
  %v39 = vld [vmem:[%s0] sm:$0xff]
  %v40 = vld [vmem:[%s0 + $0x8] sm:$0xff]
  %v41 = vld [vmem:[%s0 + $0x10] sm:$0xff]
  %v42 = vld [vmem:[%s0 + $0x18] sm:$0xff]
  %v43 = vld [vmem:[%s0 + $0x20] sm:$0xff]
  %v44 = vld [vmem:[%s0 + $0x28] sm:$0xff]
  %v45 = vld [vmem:[%s0 + $0x30] sm:$0xff]
  %v46 = vld [vmem:[%s0 + $0x38] sm:$0xff]
  %v47 = vld [vmem:[%s1] sm:$0xff]
  %v48 = vld [vmem:[%s1 + $0x8] sm:$0xff]
  %v49 = vld [vmem:[%s1 + $0x10] sm:$0xff]
  %v50 = vld [vmem:[%s1 + $0x18] sm:$0xff]
  %v51 = vld [vmem:[%s3] sm:$0x1]
  %v53 = vlaneseq
  %v54 = vshrl.u32 %v53, 7
  %v55 = vsub.s32 0, %v54
  %v56 = vrot.slane %v51, %v55
  %vm58 = vcmask 261120
  %v60 = vsel %vm58, %v39, 0
  %v63 = vsel %vm58, %v40, 0
  %v66 = vsel %vm58, %v41, 0
  %v69 = vsel %vm58, %v42, 0
  %v72 = vsel %vm58, %v43, 0
  %v75 = vsel %vm58, %v44, 0
  %v78 = vsel %vm58, %v45, 0
  %v81 = vsel %vm58, %v46, 0
  %83 = vmatprep.subr.mxu0 0.0
  %84 = vmatpush1.msra.mxu0 %v47
  %85 = vmatprep.subr.mxu0 0.0
  %86 = vmatpush1.msra.mxu0 %v48
  %87 = vmatprep.subr.mxu0 0.0
  %88 = vmatpush1.msra.mxu0 %v49
  %89 = vmatprep.subr.mxu0 0.0
  %90 = vmatpush1.msra.mxu0 %v50
  %91 = vmatprep.subr.mxu0 0.0
  %92 = vmatpush1.msra.mxu0 0.0
  %93 = vmatprep.subr.mxu0 0.0
  %94 = vmatpush1.msra.mxu0 0.0
  %95 = vmatprep.subr.mxu0 0.0
  %96 = vmatpush1.msra.mxu0 0.0
  %97 = vmatprep.subr.mxu0 0.0
  %98 = vmatpush1.msra.mxu0 0.0
  %99 = vmatprep.subr.mxu0 0.0
  %100 = vmatpush1.msra.mxu0 0.0
  %101 = vmatprep.subr.mxu0 0.0
  %102 = vmatpush1.msra.mxu0 0.0
  %103 = vmatprep.subr.mxu0 0.0
  %104 = vmatpush1.msra.mxu0 0.0
  %105 = vmatprep.subr.mxu0 0.0
  %106 = vmatpush1.msra.mxu0 0.0
  %107 = vmatprep.subr.mxu0 0.0
  %108 = vmatpush1.msra.mxu0 0.0
  %109 = vmatprep.subr.mxu0 0.0
  %110 = vmatpush1.msra.mxu0 0.0
  %111 = vmatprep.subr.mxu0 0.0
  %112 = vmatpush1.msra.mxu0 0.0
  %113 = vmatprep.subr.mxu0 0.0
  %114 = vmatpush1.msra.mxu0 0.0
  %115 = vmatprep.subr.mxu0 0.0
  %116 = vmatpush1.msra.mxu0 0.0
  %117 = vmatprep.subr.mxu0 0.0
  %118 = vmatpush1.msra.mxu0 0.0
  %119 = vmatprep.subr.mxu0 0.0
  %120 = vmatpush1.msra.mxu0 0.0
  %121 = vmatprep.subr.mxu0 0.0
  %122 = vmatpush1.msra.mxu0 0.0
  %123 = vmatprep.subr.mxu0 0.0
  %124 = vmatpush1.msra.mxu0 0.0
  %125 = vmatprep.subr.mxu0 0.0
  %126 = vmatpush1.msra.mxu0 0.0
  %127 = vmatprep.subr.mxu0 0.0
  %128 = vmatpush1.msra.mxu0 0.0
  %129 = vmatprep.subr.mxu0 0.0
  %130 = vmatpush1.msra.mxu0 0.0
  %131 = vmatprep.subr.mxu0 0.0
  %132 = vmatpush1.msra.mxu0 0.0
  %133 = vmatprep.subr.mxu0 0.0
  %134 = vmatpush1.msra.mxu0 0.0
  %135 = vmatprep.subr.mxu0 0.0
  %136 = vmatpush1.msra.mxu0 0.0
  %137 = vmatprep.subr.mxu0 0.0
  %138 = vmatpush1.msra.mxu0 0.0
  %139 = vmatprep.subr.mxu0 0.0
  %140 = vmatpush1.msra.mxu0 0.0
  %141 = vmatprep.subr.mxu0 0.0
  %142 = vmatpush1.msra.mxu0 0.0
  %143 = vmatprep.subr.mxu0 0.0
  %144 = vmatpush1.msra.mxu0 0.0
  %145 = vmatprep.subr.mxu0 0.0
  %146 = vmatpush1.msra.mxu0 0.0
  %147 = vmatprep.mubr.f32.mxu0 0.0
  %148 = vmatmul.mubr.f32.gmra.mrb[0].mxu0 %v60
  %v149 = vpop.f32.mrb[0].mxu0
  %v150 = vadd.f32 %v56, %v149
  %v151 = vpop.f32.mrb[0].mxu0
  %152 = vmatprep.mubr.f32.mxu0 0.0
  %153 = vmatmul.mubr.f32.gmra.mrb[0].mxu0 %v63
  %v154 = vpop.f32.mrb[0].mxu0
  %v155 = vadd.f32 %v56, %v154
  %v156 = vpop.f32.mrb[0].mxu0
  %157 = vmatprep.mubr.f32.mxu0 0.0
  %158 = vmatmul.mubr.f32.gmra.mrb[0].mxu0 %v66
  %v159 = vpop.f32.mrb[0].mxu0
  %v160 = vadd.f32 %v56, %v159
  %v161 = vpop.f32.mrb[0].mxu0
  %162 = vmatprep.mubr.f32.mxu0 0.0
  %163 = vmatmul.mubr.f32.gmra.mrb[0].mxu0 %v69
  %v164 = vpop.f32.mrb[0].mxu0
  %v165 = vadd.f32 %v56, %v164
  %v166 = vpop.f32.mrb[0].mxu0
  %167 = vmatprep.mubr.f32.mxu0 0.0
  %168 = vmatmul.mubr.f32.gmra.mrb[0].mxu0 %v72
  %v169 = vpop.f32.mrb[0].mxu0
  %v170 = vadd.f32 %v56, %v169
  %v171 = vpop.f32.mrb[0].mxu0
  %172 = vmatprep.mubr.f32.mxu0 0.0
  %173 = vmatmul.mubr.f32.gmra.mrb[0].mxu0 %v75
  %v174 = vpop.f32.mrb[0].mxu0
  %v175 = vadd.f32 %v56, %v174
  %v176 = vpop.f32.mrb[0].mxu0
  %177 = vmatprep.mubr.f32.mxu0 0.0
  %178 = vmatmul.mubr.f32.gmra.mrb[0].mxu0 %v78
  %v179 = vpop.f32.mrb[0].mxu0
  %v180 = vadd.f32 %v56, %v179
  %v181 = vpop.f32.mrb[0].mxu0
  %182 = vmatprep.mubr.f32.mxu0 0.0
  %183 = vmatmul.mubr.f32.gmra.mrb[0].mxu0 %v81
  %v184 = vpop.f32.mrb[0].mxu0
  %v185 = vadd.f32 %v56, %v184
  %v186 = vpop.f32.mrb[0].mxu0
  %187 = vdwg.mxu0
  %188 = vst [vmem:[#allocation2] sm:$0xff] %v150
  %189 = vst [vmem:[#allocation2 + $0x8] sm:$0xff] %v155
  %190 = vst [vmem:[#allocation2 + $0x10] sm:$0xff] %v160
  %191 = vst [vmem:[#allocation2 + $0x18] sm:$0xff] %v165
  %192 = vst [vmem:[#allocation2 + $0x20] sm:$0xff] %v170
  %193 = vst [vmem:[#allocation2 + $0x28] sm:$0xff] %v175
  %194 = vst [vmem:[#allocation2 + $0x30] sm:$0xff] %v180
  %195 = vst [vmem:[#allocation2 + $0x38] sm:$0xff] %v185
  %v196 = vld [vmem:[#allocation2] sm:$0xff]
  %v197 = vld [vmem:[%s2] sm:$0xff]
  %v198 = vld [vmem:[%s2 + $0x8] sm:$0xff]
  %v199 = vld [vmem:[%s2 + $0x10] sm:$0xff]
  %v200 = vld [vmem:[%s2 + $0x18] sm:$0xff]
  %v202 = vsel %vm58, 0.0, 0
  %204 = vmatprep.subr.mxu0 0.0
  %205 = vmatpush1.msra.mxu0 %v197
  %206 = vmatprep.subr.mxu0 0.0
  %207 = vmatpush1.msra.mxu0 %v198
  %208 = vmatprep.subr.mxu0 0.0
  %209 = vmatpush1.msra.mxu0 %v199
  %210 = vmatprep.subr.mxu0 0.0
  %211 = vmatpush1.msra.mxu0 %v200
  %212 = vmatprep.subr.mxu0 0.0
  %213 = vmatpush1.msra.mxu0 0.0
  %214 = vmatprep.subr.mxu0 0.0
  %215 = vmatpush1.msra.mxu0 0.0
  %216 = vmatprep.subr.mxu0 0.0
  %217 = vmatpush1.msra.mxu0 0.0
  %218 = vmatprep.subr.mxu0 0.0
  %219 = vmatpush1.msra.mxu0 0.0
  %220 = vmatprep.subr.mxu0 0.0
  %221 = vmatpush1.msra.mxu0 0.0
  %222 = vmatprep.subr.mxu0 0.0
  %223 = vmatpush1.msra.mxu0 0.0
  %224 = vmatprep.subr.mxu0 0.0
  %225 = vmatpush1.msra.mxu0 0.0
  %226 = vmatprep.subr.mxu0 0.0
  %227 = vmatpush1.msra.mxu0 0.0
  %228 = vmatprep.subr.mxu0 0.0
  %229 = vmatpush1.msra.mxu0 0.0
  %230 = vmatprep.subr.mxu0 0.0
  %231 = vmatpush1.msra.mxu0 0.0
  %232 = vmatprep.subr.mxu0 0.0
  %233 = vmatpush1.msra.mxu0 0.0
  %234 = vmatprep.subr.mxu0 0.0
  %235 = vmatpush1.msra.mxu0 0.0
  %236 = vmatprep.subr.mxu0 0.0
  %237 = vmatpush1.msra.mxu0 0.0
  %238 = vmatprep.subr.mxu0 0.0
  %239 = vmatpush1.msra.mxu0 0.0
  %240 = vmatprep.subr.mxu0 0.0
  %241 = vmatpush1.msra.mxu0 0.0
  %242 = vmatprep.subr.mxu0 0.0
  %243 = vmatpush1.msra.mxu0 0.0
  %244 = vmatprep.subr.mxu0 0.0
  %245 = vmatpush1.msra.mxu0 0.0
  %246 = vmatprep.subr.mxu0 0.0
  %247 = vmatpush1.msra.mxu0 0.0
  %248 = vmatprep.subr.mxu0 0.0
  %249 = vmatpush1.msra.mxu0 0.0
  %250 = vmatprep.subr.mxu0 0.0
  %251 = vmatpush1.msra.mxu0 0.0
  %252 = vmatprep.subr.mxu0 0.0
  %253 = vmatpush1.msra.mxu0 0.0
  %254 = vmatprep.subr.mxu0 0.0
  %255 = vmatpush1.msra.mxu0 0.0
  %256 = vmatprep.subr.mxu0 0.0
  %257 = vmatpush1.msra.mxu0 0.0
  %258 = vmatprep.subr.mxu0 0.0
  %259 = vmatpush1.msra.mxu0 0.0
  %260 = vmatprep.subr.mxu0 0.0
  %261 = vmatpush1.msra.mxu0 0.0
  %262 = vmatprep.subr.mxu0 0.0
  %263 = vmatpush1.msra.mxu0 0.0
  %264 = vmatprep.subr.mxu0 0.0
  %265 = vmatpush1.msra.mxu0 0.0
  %266 = vmatprep.subr.mxu0 0.0
  %267 = vmatpush1.msra.mxu0 0.0
  %268 = vmatprep.mubr.f32.mxu0 0.0
  %269 = vmatmul.mubr.f32.gmra.mrb[0].mxu0 %v202
  %v270 = vpop.f32.mrb[0].mxu0
  %v271 = vadd.f32 0.0, %v270
  %v272 = vpop.f32.mrb[0].mxu0
  %273 = vdwg.mxu0
  %v274 = vadd.f32 %v196, %v271
  %v275 = vtanh.pop %v274
  %v276 = vxor.u32 %v274, 2147483648
  %v277 = vmul.f32 %v276, 1.442695
  %v278 = vpow.pop %v277
  %v279 = vadd.f32 %v278, 1.0
  %v280 = vrcp.pop %v279
  %v281 = vmul.f32 1.0, %v280
  %v282 = vsel %vm38, %v275, %v281
  %v283 = vmul.f32 %v282, 0.0
  %285 = vrot.lane.b32.xlu0 %v282, 64
  %v286 = vpop.permute.xlu0 %285
  %v288 = vmul.f32 %v282, %v286
  %290 = vrot.lane.b32.xlu0 %v288, 32
  %v291 = vpop.permute.xlu0 %290
  %v293 = vadd.f32 %v283, %v291
  %v294 = vtanh.pop %v293
  %296 = vrot.lane.b32.xlu0 %v294, 64
  %v297 = vpop.permute.xlu0 %296
  %v299 = vmul.f32 %v282, %v297
  %301 = vrot.lane.b32.xlu0 %v299, 32
  %v302 = vpop.permute.xlu0 %301
  %304 = vst.msk [vmem:[#allocation3] sm:$0xff] %vm58, %v302
  %v305 = vld [vmem:[#allocation2 + $0x8] sm:$0xff]
  %v306 = vld [vmem:[%s2] sm:$0xff]
  %v307 = vld [vmem:[%s2 + $0x8] sm:$0xff]
  %v308 = vld [vmem:[%s2 + $0x10] sm:$0xff]
  %v309 = vld [vmem:[%s2 + $0x18] sm:$0xff]
  %v310 = vsel %vm58, %v302, 0
  %312 = vmatprep.subr.mxu0 0.0
  %313 = vmatpush1.msra.mxu0 %v306
  %314 = vmatprep.subr.mxu0 0.0
  %315 = vmatpush1.msra.mxu0 %v307
  %316 = vmatprep.subr.mxu0 0.0
  %317 = vmatpush1.msra.mxu0 %v308
  %318 = vmatprep.subr.mxu0 0.0
  %319 = vmatpush1.msra.mxu0 %v309
  %320 = vmatprep.subr.mxu0 0.0
  %321 = vmatpush1.msra.mxu0 0.0
  %322 = vmatprep.subr.mxu0 0.0
  %323 = vmatpush1.msra.mxu0 0.0
  %324 = vmatprep.subr.mxu0 0.0
  %325 = vmatpush1.msra.mxu0 0.0
  %326 = vmatprep.subr.mxu0 0.0
  %327 = vmatpush1.msra.mxu0 0.0
  %328 = vmatprep.subr.mxu0 0.0
  %329 = vmatpush1.msra.mxu0 0.0
  %330 = vmatprep.subr.mxu0 0.0
  %331 = vmatpush1.msra.mxu0 0.0
  %332 = vmatprep.subr.mxu0 0.0
  %333 = vmatpush1.msra.mxu0 0.0
  %334 = vmatprep.subr.mxu0 0.0
  %335 = vmatpush1.msra.mxu0 0.0
  %336 = vmatprep.subr.mxu0 0.0
  %337 = vmatpush1.msra.mxu0 0.0
  %338 = vmatprep.subr.mxu0 0.0
  %339 = vmatpush1.msra.mxu0 0.0
  %340 = vmatprep.subr.mxu0 0.0
  %341 = vmatpush1.msra.mxu0 0.0
  %342 = vmatprep.subr.mxu0 0.0
  %343 = vmatpush1.msra.mxu0 0.0
  %344 = vmatprep.subr.mxu0 0.0
  %345 = vmatpush1.msra.mxu0 0.0
  %346 = vmatprep.subr.mxu0 0.0
  %347 = vmatpush1.msra.mxu0 0.0
  %348 = vmatprep.subr.mxu0 0.0
  %349 = vmatpush1.msra.mxu0 0.0
  %350 = vmatprep.subr.mxu0 0.0
  %351 = vmatpush1.msra.mxu0 0.0
  %352 = vmatprep.subr.mxu0 0.0
  %353 = vmatpush1.msra.mxu0 0.0
  %354 = vmatprep.subr.mxu0 0.0
  %355 = vmatpush1.msra.mxu0 0.0
  %356 = vmatprep.subr.mxu0 0.0
  %357 = vmatpush1.msra.mxu0 0.0
  %358 = vmatprep.subr.mxu0 0.0
  %359 = vmatpush1.msra.mxu0 0.0
  %360 = vmatprep.subr.mxu0 0.0
  %361 = vmatpush1.msra.mxu0 0.0
  %362 = vmatprep.subr.mxu0 0.0
  %363 = vmatpush1.msra.mxu0 0.0
  %364 = vmatprep.subr.mxu0 0.0
  %365 = vmatpush1.msra.mxu0 0.0
  %366 = vmatprep.subr.mxu0 0.0
  %367 = vmatpush1.msra.mxu0 0.0
  %368 = vmatprep.subr.mxu0 0.0
  %369 = vmatpush1.msra.mxu0 0.0
  %370 = vmatprep.subr.mxu0 0.0
  %371 = vmatpush1.msra.mxu0 0.0
  %372 = vmatprep.subr.mxu0 0.0
  %373 = vmatpush1.msra.mxu0 0.0
  %374 = vmatprep.subr.mxu0 0.0
  %375 = vmatpush1.msra.mxu0 0.0
  %376 = vmatprep.mubr.f32.mxu0 0.0
  %377 = vmatmul.mubr.f32.gmra.mrb[0].mxu0 %v310
  %v378 = vpop.f32.mrb[0].mxu0
  %v379 = vadd.f32 0.0, %v378
  %v380 = vpop.f32.mrb[0].mxu0
  %381 = vdwg.mxu0
  %v382 = vadd.f32 %v305, %v379
  %v383 = vtanh.pop %v382
  %v384 = vxor.u32 %v382, 2147483648
  %v385 = vmul.f32 %v384, 1.442695
  %v386 = vpow.pop %v385
  %v387 = vadd.f32 %v386, 1.0
  %v388 = vrcp.pop %v387
  %v389 = vmul.f32 1.0, %v388
  %v390 = vsel %vm38, %v383, %v389
  %v391 = vmul.f32 %v390, %v293
  %393 = vrot.lane.b32.xlu0 %v390, 64
  %v394 = vpop.permute.xlu0 %393
  %v396 = vmul.f32 %v390, %v394
  %398 = vrot.lane.b32.xlu0 %v396, 32
  %v399 = vpop.permute.xlu0 %398
  %v401 = vadd.f32 %v391, %v399
  %v402 = vtanh.pop %v401
  %404 = vrot.lane.b32.xlu0 %v402, 64
  %v405 = vpop.permute.xlu0 %404
  %v407 = vmul.f32 %v390, %v405
  %409 = vrot.lane.b32.xlu0 %v407, 32
  %v410 = vpop.permute.xlu0 %409
  %412 = vst.msk [vmem:[#allocation3 + $0x8] sm:$0xff] %vm58, %v410
  %v413 = vld [vmem:[#allocation2 + $0x10] sm:$0xff]
  %v414 = vld [vmem:[%s2] sm:$0xff]
  %v415 = vld [vmem:[%s2 + $0x8] sm:$0xff]
  %v416 = vld [vmem:[%s2 + $0x10] sm:$0xff]
  %v417 = vld [vmem:[%s2 + $0x18] sm:$0xff]
  %v418 = vsel %vm58, %v410, 0
  %420 = vmatprep.subr.mxu0 0.0
  %421 = vmatpush1.msra.mxu0 %v414
  %422 = vmatprep.subr.mxu0 0.0
  %423 = vmatpush1.msra.mxu0 %v415
  %424 = vmatprep.subr.mxu0 0.0
  %425 = vmatpush1.msra.mxu0 %v416
  %426 = vmatprep.subr.mxu0 0.0
  %427 = vmatpush1.msra.mxu0 %v417
  %428 = vmatprep.subr.mxu0 0.0
  %429 = vmatpush1.msra.mxu0 0.0
  %430 = vmatprep.subr.mxu0 0.0
  %431 = vmatpush1.msra.mxu0 0.0
  %432 = vmatprep.subr.mxu0 0.0
  %433 = vmatpush1.msra.mxu0 0.0
  %434 = vmatprep.subr.mxu0 0.0
  %435 = vmatpush1.msra.mxu0 0.0
  %436 = vmatprep.subr.mxu0 0.0
  %437 = vmatpush1.msra.mxu0 0.0
  %438 = vmatprep.subr.mxu0 0.0
  %439 = vmatpush1.msra.mxu0 0.0
  %440 = vmatprep.subr.mxu0 0.0
  %441 = vmatpush1.msra.mxu0 0.0
  %442 = vmatprep.subr.mxu0 0.0
  %443 = vmatpush1.msra.mxu0 0.0
  %444 = vmatprep.subr.mxu0 0.0
  %445 = vmatpush1.msra.mxu0 0.0
  %446 = vmatprep.subr.mxu0 0.0
  %447 = vmatpush1.msra.mxu0 0.0
  %448 = vmatprep.subr.mxu0 0.0
  %449 = vmatpush1.msra.mxu0 0.0
  %450 = vmatprep.subr.mxu0 0.0
  %451 = vmatpush1.msra.mxu0 0.0
  %452 = vmatprep.subr.mxu0 0.0
  %453 = vmatpush1.msra.mxu0 0.0
  %454 = vmatprep.subr.mxu0 0.0
  %455 = vmatpush1.msra.mxu0 0.0
  %456 = vmatprep.subr.mxu0 0.0
  %457 = vmatpush1.msra.mxu0 0.0
  %458 = vmatprep.subr.mxu0 0.0
  %459 = vmatpush1.msra.mxu0 0.0
  %460 = vmatprep.subr.mxu0 0.0
  %461 = vmatpush1.msra.mxu0 0.0
  %462 = vmatprep.subr.mxu0 0.0
  %463 = vmatpush1.msra.mxu0 0.0
  %464 = vmatprep.subr.mxu0 0.0
  %465 = vmatpush1.msra.mxu0 0.0
  %466 = vmatprep.subr.mxu0 0.0
  %467 = vmatpush1.msra.mxu0 0.0
  %468 = vmatprep.subr.mxu0 0.0
  %469 = vmatpush1.msra.mxu0 0.0
  %470 = vmatprep.subr.mxu0 0.0
  %471 = vmatpush1.msra.mxu0 0.0
  %472 = vmatprep.subr.mxu0 0.0
  %473 = vmatpush1.msra.mxu0 0.0
  %474 = vmatprep.subr.mxu0 0.0
  %475 = vmatpush1.msra.mxu0 0.0
  %476 = vmatprep.subr.mxu0 0.0
  %477 = vmatpush1.msra.mxu0 0.0
  %478 = vmatprep.subr.mxu0 0.0
  %479 = vmatpush1.msra.mxu0 0.0
  %480 = vmatprep.subr.mxu0 0.0
  %481 = vmatpush1.msra.mxu0 0.0
  %482 = vmatprep.subr.mxu0 0.0
  %483 = vmatpush1.msra.mxu0 0.0
  %484 = vmatprep.mubr.f32.mxu0 0.0
  %485 = vmatmul.mubr.f32.gmra.mrb[0].mxu0 %v418
  %v486 = vpop.f32.mrb[0].mxu0
  %v487 = vadd.f32 0.0, %v486
  %v488 = vpop.f32.mrb[0].mxu0
  %489 = vdwg.mxu0
  %v490 = vadd.f32 %v413, %v487
  %v491 = vtanh.pop %v490
  %v492 = vxor.u32 %v490, 2147483648
  %v493 = vmul.f32 %v492, 1.442695
  %v494 = vpow.pop %v493
  %v495 = vadd.f32 %v494, 1.0
  %v496 = vrcp.pop %v495
  %v497 = vmul.f32 1.0, %v496
  %v498 = vsel %vm38, %v491, %v497
  %v499 = vmul.f32 %v498, %v401
  %501 = vrot.lane.b32.xlu0 %v498, 64
  %v502 = vpop.permute.xlu0 %501
  %v504 = vmul.f32 %v498, %v502
  %506 = vrot.lane.b32.xlu0 %v504, 32
  %v507 = vpop.permute.xlu0 %506
  %v509 = vadd.f32 %v499, %v507
  %v510 = vtanh.pop %v509
  %512 = vrot.lane.b32.xlu0 %v510, 64
  %v513 = vpop.permute.xlu0 %512
  %v515 = vmul.f32 %v498, %v513
  %517 = vrot.lane.b32.xlu0 %v515, 32
  %v518 = vpop.permute.xlu0 %517
  %520 = vst.msk [vmem:[#allocation3 + $0x10] sm:$0xff] %vm58, %v518
  %v521 = vld [vmem:[#allocation2 + $0x18] sm:$0xff]
  %v522 = vld [vmem:[%s2] sm:$0xff]
  %v523 = vld [vmem:[%s2 + $0x8] sm:$0xff]
  %v524 = vld [vmem:[%s2 + $0x10] sm:$0xff]
  %v525 = vld [vmem:[%s2 + $0x18] sm:$0xff]
  %v526 = vsel %vm58, %v518, 0
  %528 = vmatprep.subr.mxu0 0.0
  %529 = vmatpush1.msra.mxu0 %v522
  %530 = vmatprep.subr.mxu0 0.0
  %531 = vmatpush1.msra.mxu0 %v523
  %532 = vmatprep.subr.mxu0 0.0
  %533 = vmatpush1.msra.mxu0 %v524
  %534 = vmatprep.subr.mxu0 0.0
  %535 = vmatpush1.msra.mxu0 %v525
  %536 = vmatprep.subr.mxu0 0.0
  %537 = vmatpush1.msra.mxu0 0.0
  %538 = vmatprep.subr.mxu0 0.0
  %539 = vmatpush1.msra.mxu0 0.0
  %540 = vmatprep.subr.mxu0 0.0
  %541 = vmatpush1.msra.mxu0 0.0
  %542 = vmatprep.subr.mxu0 0.0
  %543 = vmatpush1.msra.mxu0 0.0
  %544 = vmatprep.subr.mxu0 0.0
  %545 = vmatpush1.msra.mxu0 0.0
  %546 = vmatprep.subr.mxu0 0.0
  %547 = vmatpush1.msra.mxu0 0.0
  %548 = vmatprep.subr.mxu0 0.0
  %549 = vmatpush1.msra.mxu0 0.0
  %550 = vmatprep.subr.mxu0 0.0
  %551 = vmatpush1.msra.mxu0 0.0
  %552 = vmatprep.subr.mxu0 0.0
  %553 = vmatpush1.msra.mxu0 0.0
  %554 = vmatprep.subr.mxu0 0.0
  %555 = vmatpush1.msra.mxu0 0.0
  %556 = vmatprep.subr.mxu0 0.0
  %557 = vmatpush1.msra.mxu0 0.0
  %558 = vmatprep.subr.mxu0 0.0
  %559 = vmatpush1.msra.mxu0 0.0
  %560 = vmatprep.subr.mxu0 0.0
  %561 = vmatpush1.msra.mxu0 0.0
  %562 = vmatprep.subr.mxu0 0.0
  %563 = vmatpush1.msra.mxu0 0.0
  %564 = vmatprep.subr.mxu0 0.0
  %565 = vmatpush1.msra.mxu0 0.0
  %566 = vmatprep.subr.mxu0 0.0
  %567 = vmatpush1.msra.mxu0 0.0
  %568 = vmatprep.subr.mxu0 0.0
  %569 = vmatpush1.msra.mxu0 0.0
  %570 = vmatprep.subr.mxu0 0.0
  %571 = vmatpush1.msra.mxu0 0.0
  %572 = vmatprep.subr.mxu0 0.0
  %573 = vmatpush1.msra.mxu0 0.0
  %574 = vmatprep.subr.mxu0 0.0
  %575 = vmatpush1.msra.mxu0 0.0
  %576 = vmatprep.subr.mxu0 0.0
  %577 = vmatpush1.msra.mxu0 0.0
  %578 = vmatprep.subr.mxu0 0.0
  %579 = vmatpush1.msra.mxu0 0.0
  %580 = vmatprep.subr.mxu0 0.0
  %581 = vmatpush1.msra.mxu0 0.0
  %582 = vmatprep.subr.mxu0 0.0
  %583 = vmatpush1.msra.mxu0 0.0
  %584 = vmatprep.subr.mxu0 0.0
  %585 = vmatpush1.msra.mxu0 0.0
  %586 = vmatprep.subr.mxu0 0.0
  %587 = vmatpush1.msra.mxu0 0.0
  %588 = vmatprep.subr.mxu0 0.0
  %589 = vmatpush1.msra.mxu0 0.0
  %590 = vmatprep.subr.mxu0 0.0
  %591 = vmatpush1.msra.mxu0 0.0
  %592 = vmatprep.mubr.f32.mxu0 0.0
  %593 = vmatmul.mubr.f32.gmra.mrb[0].mxu0 %v526
  %v594 = vpop.f32.mrb[0].mxu0
  %v595 = vadd.f32 0.0, %v594
  %v596 = vpop.f32.mrb[0].mxu0
  %597 = vdwg.mxu0
  %v598 = vadd.f32 %v521, %v595
  %v599 = vtanh.pop %v598
  %v600 = vxor.u32 %v598, 2147483648
  %v601 = vmul.f32 %v600, 1.442695
  %v602 = vpow.pop %v601
  %v603 = vadd.f32 %v602, 1.0
  %v604 = vrcp.pop %v603
  %v605 = vmul.f32 1.0, %v604
  %v606 = vsel %vm38, %v599, %v605
  %v607 = vmul.f32 %v606, %v509
  %609 = vrot.lane.b32.xlu0 %v606, 64
  %v610 = vpop.permute.xlu0 %609
  %v612 = vmul.f32 %v606, %v610
  %614 = vrot.lane.b32.xlu0 %v612, 32
  %v615 = vpop.permute.xlu0 %614
  %v617 = vadd.f32 %v607, %v615
  %v618 = vtanh.pop %v617
  %620 = vrot.lane.b32.xlu0 %v618, 64
  %v621 = vpop.permute.xlu0 %620
  %v623 = vmul.f32 %v606, %v621
  %625 = vrot.lane.b32.xlu0 %v623, 32
  %v626 = vpop.permute.xlu0 %625
  %628 = vst.msk [vmem:[#allocation3 + $0x18] sm:$0xff] %vm58, %v626
  %v629 = vld [vmem:[#allocation2 + $0x20] sm:$0xff]
  %v630 = vld [vmem:[%s2] sm:$0xff]
  %v631 = vld [vmem:[%s2 + $0x8] sm:$0xff]
  %v632 = vld [vmem:[%s2 + $0x10] sm:$0xff]
  %v633 = vld [vmem:[%s2 + $0x18] sm:$0xff]
  %v634 = vsel %vm58, %v626, 0
  %636 = vmatprep.subr.mxu0 0.0
  %637 = vmatpush1.msra.mxu0 %v630
  %638 = vmatprep.subr.mxu0 0.0
  %639 = vmatpush1.msra.mxu0 %v631
  %640 = vmatprep.subr.mxu0 0.0
  %641 = vmatpush1.msra.mxu0 %v632
  %642 = vmatprep.subr.mxu0 0.0
  %643 = vmatpush1.msra.mxu0 %v633
  %644 = vmatprep.subr.mxu0 0.0
  %645 = vmatpush1.msra.mxu0 0.0
  %646 = vmatprep.subr.mxu0 0.0
  %647 = vmatpush1.msra.mxu0 0.0
  %648 = vmatprep.subr.mxu0 0.0
  %649 = vmatpush1.msra.mxu0 0.0
  %650 = vmatprep.subr.mxu0 0.0
  %651 = vmatpush1.msra.mxu0 0.0
  %652 = vmatprep.subr.mxu0 0.0
  %653 = vmatpush1.msra.mxu0 0.0
  %654 = vmatprep.subr.mxu0 0.0
  %655 = vmatpush1.msra.mxu0 0.0
  %656 = vmatprep.subr.mxu0 0.0
  %657 = vmatpush1.msra.mxu0 0.0
  %658 = vmatprep.subr.mxu0 0.0
  %659 = vmatpush1.msra.mxu0 0.0
  %660 = vmatprep.subr.mxu0 0.0
  %661 = vmatpush1.msra.mxu0 0.0
  %662 = vmatprep.subr.mxu0 0.0
  %663 = vmatpush1.msra.mxu0 0.0
  %664 = vmatprep.subr.mxu0 0.0
  %665 = vmatpush1.msra.mxu0 0.0
  %666 = vmatprep.subr.mxu0 0.0
  %667 = vmatpush1.msra.mxu0 0.0
  %668 = vmatprep.subr.mxu0 0.0
  %669 = vmatpush1.msra.mxu0 0.0
  %670 = vmatprep.subr.mxu0 0.0
  %671 = vmatpush1.msra.mxu0 0.0
  %672 = vmatprep.subr.mxu0 0.0
  %673 = vmatpush1.msra.mxu0 0.0
  %674 = vmatprep.subr.mxu0 0.0
  %675 = vmatpush1.msra.mxu0 0.0
  %676 = vmatprep.subr.mxu0 0.0
  %677 = vmatpush1.msra.mxu0 0.0
  %678 = vmatprep.subr.mxu0 0.0
  %679 = vmatpush1.msra.mxu0 0.0
  %680 = vmatprep.subr.mxu0 0.0
  %681 = vmatpush1.msra.mxu0 0.0
  %682 = vmatprep.subr.mxu0 0.0
  %683 = vmatpush1.msra.mxu0 0.0
  %684 = vmatprep.subr.mxu0 0.0
  %685 = vmatpush1.msra.mxu0 0.0
  %686 = vmatprep.subr.mxu0 0.0
  %687 = vmatpush1.msra.mxu0 0.0
  %688 = vmatprep.subr.mxu0 0.0
  %689 = vmatpush1.msra.mxu0 0.0
  %690 = vmatprep.subr.mxu0 0.0
  %691 = vmatpush1.msra.mxu0 0.0
  %692 = vmatprep.subr.mxu0 0.0
  %693 = vmatpush1.msra.mxu0 0.0
  %694 = vmatprep.subr.mxu0 0.0
  %695 = vmatpush1.msra.mxu0 0.0
  %696 = vmatprep.subr.mxu0 0.0
  %697 = vmatpush1.msra.mxu0 0.0
  %698 = vmatprep.subr.mxu0 0.0
  %699 = vmatpush1.msra.mxu0 0.0
  %700 = vmatprep.mubr.f32.mxu0 0.0
  %701 = vmatmul.mubr.f32.gmra.mrb[0].mxu0 %v634
  %v702 = vpop.f32.mrb[0].mxu0
  %v703 = vadd.f32 0.0, %v702
  %v704 = vpop.f32.mrb[0].mxu0
  %705 = vdwg.mxu0
  %v706 = vadd.f32 %v629, %v703
  %v707 = vtanh.pop %v706
  %v708 = vxor.u32 %v706, 2147483648
  %v709 = vmul.f32 %v708, 1.442695
  %v710 = vpow.pop %v709
  %v711 = vadd.f32 %v710, 1.0
  %v712 = vrcp.pop %v711
  %v713 = vmul.f32 1.0, %v712
  %v714 = vsel %vm38, %v707, %v713
  %v715 = vmul.f32 %v714, %v617
  %717 = vrot.lane.b32.xlu0 %v714, 64
  %v718 = vpop.permute.xlu0 %717
  %v720 = vmul.f32 %v714, %v718
  %722 = vrot.lane.b32.xlu0 %v720, 32
  %v723 = vpop.permute.xlu0 %722
  %v725 = vadd.f32 %v715, %v723
  %v726 = vtanh.pop %v725
  %728 = vrot.lane.b32.xlu0 %v726, 64
  %v729 = vpop.permute.xlu0 %728
  %v731 = vmul.f32 %v714, %v729
  %733 = vrot.lane.b32.xlu0 %v731, 32
  %v734 = vpop.permute.xlu0 %733
  %736 = vst.msk [vmem:[#allocation3 + $0x20] sm:$0xff] %vm58, %v734
  %v737 = vld [vmem:[#allocation2 + $0x28] sm:$0xff]
  %v738 = vld [vmem:[%s2] sm:$0xff]
  %v739 = vld [vmem:[%s2 + $0x8] sm:$0xff]
  %v740 = vld [vmem:[%s2 + $0x10] sm:$0xff]
  %v741 = vld [vmem:[%s2 + $0x18] sm:$0xff]
  %v742 = vsel %vm58, %v734, 0
  %744 = vmatprep.subr.mxu0 0.0
  %745 = vmatpush1.msra.mxu0 %v738
  %746 = vmatprep.subr.mxu0 0.0
  %747 = vmatpush1.msra.mxu0 %v739
  %748 = vmatprep.subr.mxu0 0.0
  %749 = vmatpush1.msra.mxu0 %v740
  %750 = vmatprep.subr.mxu0 0.0
  %751 = vmatpush1.msra.mxu0 %v741
  %752 = vmatprep.subr.mxu0 0.0
  %753 = vmatpush1.msra.mxu0 0.0
  %754 = vmatprep.subr.mxu0 0.0
  %755 = vmatpush1.msra.mxu0 0.0
  %756 = vmatprep.subr.mxu0 0.0
  %757 = vmatpush1.msra.mxu0 0.0
  %758 = vmatprep.subr.mxu0 0.0
  %759 = vmatpush1.msra.mxu0 0.0
  %760 = vmatprep.subr.mxu0 0.0
  %761 = vmatpush1.msra.mxu0 0.0
  %762 = vmatprep.subr.mxu0 0.0
  %763 = vmatpush1.msra.mxu0 0.0
  %764 = vmatprep.subr.mxu0 0.0
  %765 = vmatpush1.msra.mxu0 0.0
  %766 = vmatprep.subr.mxu0 0.0
  %767 = vmatpush1.msra.mxu0 0.0
  %768 = vmatprep.subr.mxu0 0.0
  %769 = vmatpush1.msra.mxu0 0.0
  %770 = vmatprep.subr.mxu0 0.0
  %771 = vmatpush1.msra.mxu0 0.0
  %772 = vmatprep.subr.mxu0 0.0
  %773 = vmatpush1.msra.mxu0 0.0
  %774 = vmatprep.subr.mxu0 0.0
  %775 = vmatpush1.msra.mxu0 0.0
  %776 = vmatprep.subr.mxu0 0.0
  %777 = vmatpush1.msra.mxu0 0.0
  %778 = vmatprep.subr.mxu0 0.0
  %779 = vmatpush1.msra.mxu0 0.0
  %780 = vmatprep.subr.mxu0 0.0
  %781 = vmatpush1.msra.mxu0 0.0
  %782 = vmatprep.subr.mxu0 0.0
  %783 = vmatpush1.msra.mxu0 0.0
  %784 = vmatprep.subr.mxu0 0.0
  %785 = vmatpush1.msra.mxu0 0.0
  %786 = vmatprep.subr.mxu0 0.0
  %787 = vmatpush1.msra.mxu0 0.0
  %788 = vmatprep.subr.mxu0 0.0
  %789 = vmatpush1.msra.mxu0 0.0
  %790 = vmatprep.subr.mxu0 0.0
  %791 = vmatpush1.msra.mxu0 0.0
  %792 = vmatprep.subr.mxu0 0.0
  %793 = vmatpush1.msra.mxu0 0.0
  %794 = vmatprep.subr.mxu0 0.0
  %795 = vmatpush1.msra.mxu0 0.0
  %796 = vmatprep.subr.mxu0 0.0
  %797 = vmatpush1.msra.mxu0 0.0
  %798 = vmatprep.subr.mxu0 0.0
  %799 = vmatpush1.msra.mxu0 0.0
  %800 = vmatprep.subr.mxu0 0.0
  %801 = vmatpush1.msra.mxu0 0.0
  %802 = vmatprep.subr.mxu0 0.0
  %803 = vmatpush1.msra.mxu0 0.0
  %804 = vmatprep.subr.mxu0 0.0
  %805 = vmatpush1.msra.mxu0 0.0
  %806 = vmatprep.subr.mxu0 0.0
  %807 = vmatpush1.msra.mxu0 0.0
  %808 = vmatprep.mubr.f32.mxu0 0.0
  %809 = vmatmul.mubr.f32.gmra.mrb[0].mxu0 %v742
  %v810 = vpop.f32.mrb[0].mxu0
  %v811 = vadd.f32 0.0, %v810
  %v812 = vpop.f32.mrb[0].mxu0
  %813 = vdwg.mxu0
  %v814 = vadd.f32 %v737, %v811
  %v815 = vtanh.pop %v814
  %v816 = vxor.u32 %v814, 2147483648
  %v817 = vmul.f32 %v816, 1.442695
  %v818 = vpow.pop %v817
  %v819 = vadd.f32 %v818, 1.0
  %v820 = vrcp.pop %v819
  %v821 = vmul.f32 1.0, %v820
  %v822 = vsel %vm38, %v815, %v821
  %v823 = vmul.f32 %v822, %v725
  %825 = vrot.lane.b32.xlu0 %v822, 64
  %v826 = vpop.permute.xlu0 %825
  %v828 = vmul.f32 %v822, %v826
  %830 = vrot.lane.b32.xlu0 %v828, 32
  %v831 = vpop.permute.xlu0 %830
  %v833 = vadd.f32 %v823, %v831
  %v834 = vtanh.pop %v833
  %836 = vrot.lane.b32.xlu0 %v834, 64
  %v837 = vpop.permute.xlu0 %836
  %v839 = vmul.f32 %v822, %v837
  %841 = vrot.lane.b32.xlu0 %v839, 32
  %v842 = vpop.permute.xlu0 %841
  %844 = vst.msk [vmem:[#allocation3 + $0x28] sm:$0xff] %vm58, %v842
  %v845 = vld [vmem:[#allocation2 + $0x30] sm:$0xff]
  %v846 = vld [vmem:[%s2] sm:$0xff]
  %v847 = vld [vmem:[%s2 + $0x8] sm:$0xff]
  %v848 = vld [vmem:[%s2 + $0x10] sm:$0xff]
  %v849 = vld [vmem:[%s2 + $0x18] sm:$0xff]
  %v850 = vsel %vm58, %v842, 0
  %852 = vmatprep.subr.mxu0 0.0
  %853 = vmatpush1.msra.mxu0 %v846
  %854 = vmatprep.subr.mxu0 0.0
  %855 = vmatpush1.msra.mxu0 %v847
  %856 = vmatprep.subr.mxu0 0.0
  %857 = vmatpush1.msra.mxu0 %v848
  %858 = vmatprep.subr.mxu0 0.0
  %859 = vmatpush1.msra.mxu0 %v849
  %860 = vmatprep.subr.mxu0 0.0
  %861 = vmatpush1.msra.mxu0 0.0
  %862 = vmatprep.subr.mxu0 0.0
  %863 = vmatpush1.msra.mxu0 0.0
  %864 = vmatprep.subr.mxu0 0.0
  %865 = vmatpush1.msra.mxu0 0.0
  %866 = vmatprep.subr.mxu0 0.0
  %867 = vmatpush1.msra.mxu0 0.0
  %868 = vmatprep.subr.mxu0 0.0
  %869 = vmatpush1.msra.mxu0 0.0
  %870 = vmatprep.subr.mxu0 0.0
  %871 = vmatpush1.msra.mxu0 0.0
  %872 = vmatprep.subr.mxu0 0.0
  %873 = vmatpush1.msra.mxu0 0.0
  %874 = vmatprep.subr.mxu0 0.0
  %875 = vmatpush1.msra.mxu0 0.0
  %876 = vmatprep.subr.mxu0 0.0
  %877 = vmatpush1.msra.mxu0 0.0
  %878 = vmatprep.subr.mxu0 0.0
  %879 = vmatpush1.msra.mxu0 0.0
  %880 = vmatprep.subr.mxu0 0.0
  %881 = vmatpush1.msra.mxu0 0.0
  %882 = vmatprep.subr.mxu0 0.0
  %883 = vmatpush1.msra.mxu0 0.0
  %884 = vmatprep.subr.mxu0 0.0
  %885 = vmatpush1.msra.mxu0 0.0
  %886 = vmatprep.subr.mxu0 0.0
  %887 = vmatpush1.msra.mxu0 0.0
  %888 = vmatprep.subr.mxu0 0.0
  %889 = vmatpush1.msra.mxu0 0.0
  %890 = vmatprep.subr.mxu0 0.0
  %891 = vmatpush1.msra.mxu0 0.0
  %892 = vmatprep.subr.mxu0 0.0
  %893 = vmatpush1.msra.mxu0 0.0
  %894 = vmatprep.subr.mxu0 0.0
  %895 = vmatpush1.msra.mxu0 0.0
  %896 = vmatprep.subr.mxu0 0.0
  %897 = vmatpush1.msra.mxu0 0.0
  %898 = vmatprep.subr.mxu0 0.0
  %899 = vmatpush1.msra.mxu0 0.0
  %900 = vmatprep.subr.mxu0 0.0
  %901 = vmatpush1.msra.mxu0 0.0
  %902 = vmatprep.subr.mxu0 0.0
  %903 = vmatpush1.msra.mxu0 0.0
  %904 = vmatprep.subr.mxu0 0.0
  %905 = vmatpush1.msra.mxu0 0.0
  %906 = vmatprep.subr.mxu0 0.0
  %907 = vmatpush1.msra.mxu0 0.0
  %908 = vmatprep.subr.mxu0 0.0
  %909 = vmatpush1.msra.mxu0 0.0
  %910 = vmatprep.subr.mxu0 0.0
  %911 = vmatpush1.msra.mxu0 0.0
  %912 = vmatprep.subr.mxu0 0.0
  %913 = vmatpush1.msra.mxu0 0.0
  %914 = vmatprep.subr.mxu0 0.0
  %915 = vmatpush1.msra.mxu0 0.0
  %916 = vmatprep.mubr.f32.mxu0 0.0
  %917 = vmatmul.mubr.f32.gmra.mrb[0].mxu0 %v850
  %v918 = vpop.f32.mrb[0].mxu0
  %v919 = vadd.f32 0.0, %v918
  %v920 = vpop.f32.mrb[0].mxu0
  %921 = vdwg.mxu0
  %v922 = vadd.f32 %v845, %v919
  %v923 = vtanh.pop %v922
  %v924 = vxor.u32 %v922, 2147483648
  %v925 = vmul.f32 %v924, 1.442695
  %v926 = vpow.pop %v925
  %v927 = vadd.f32 %v926, 1.0
  %v928 = vrcp.pop %v927
  %v929 = vmul.f32 1.0, %v928
  %v930 = vsel %vm38, %v923, %v929
  %v931 = vmul.f32 %v930, %v833
  %933 = vrot.lane.b32.xlu0 %v930, 64
  %v934 = vpop.permute.xlu0 %933
  %v936 = vmul.f32 %v930, %v934
  %938 = vrot.lane.b32.xlu0 %v936, 32
  %v939 = vpop.permute.xlu0 %938
  %v941 = vadd.f32 %v931, %v939
  %v942 = vtanh.pop %v941
  %944 = vrot.lane.b32.xlu0 %v942, 64
  %v945 = vpop.permute.xlu0 %944
  %v947 = vmul.f32 %v930, %v945
  %949 = vrot.lane.b32.xlu0 %v947, 32
  %v950 = vpop.permute.xlu0 %949
  %952 = vst.msk [vmem:[#allocation3 + $0x30] sm:$0xff] %vm58, %v950
  %v953 = vld [vmem:[#allocation2 + $0x38] sm:$0xff]
  %v954 = vld [vmem:[%s2] sm:$0xff]
  %v955 = vld [vmem:[%s2 + $0x8] sm:$0xff]
  %v956 = vld [vmem:[%s2 + $0x10] sm:$0xff]
  %v957 = vld [vmem:[%s2 + $0x18] sm:$0xff]
  %v958 = vsel %vm58, %v950, 0
  %960 = vmatprep.subr.mxu0 0.0
  %961 = vmatpush1.msra.mxu0 %v954
  %962 = vmatprep.subr.mxu0 0.0
  %963 = vmatpush1.msra.mxu0 %v955
  %964 = vmatprep.subr.mxu0 0.0
  %965 = vmatpush1.msra.mxu0 %v956
  %966 = vmatprep.subr.mxu0 0.0
  %967 = vmatpush1.msra.mxu0 %v957
  %968 = vmatprep.subr.mxu0 0.0
  %969 = vmatpush1.msra.mxu0 0.0
  %970 = vmatprep.subr.mxu0 0.0
  %971 = vmatpush1.msra.mxu0 0.0
  %972 = vmatprep.subr.mxu0 0.0
  %973 = vmatpush1.msra.mxu0 0.0
  %974 = vmatprep.subr.mxu0 0.0
  %975 = vmatpush1.msra.mxu0 0.0
  %976 = vmatprep.subr.mxu0 0.0
  %977 = vmatpush1.msra.mxu0 0.0
  %978 = vmatprep.subr.mxu0 0.0
  %979 = vmatpush1.msra.mxu0 0.0
  %980 = vmatprep.subr.mxu0 0.0
  %981 = vmatpush1.msra.mxu0 0.0
  %982 = vmatprep.subr.mxu0 0.0
  %983 = vmatpush1.msra.mxu0 0.0
  %984 = vmatprep.subr.mxu0 0.0
  %985 = vmatpush1.msra.mxu0 0.0
  %986 = vmatprep.subr.mxu0 0.0
  %987 = vmatpush1.msra.mxu0 0.0
  %988 = vmatprep.subr.mxu0 0.0
  %989 = vmatpush1.msra.mxu0 0.0
  %990 = vmatprep.subr.mxu0 0.0
  %991 = vmatpush1.msra.mxu0 0.0
  %992 = vmatprep.subr.mxu0 0.0
  %993 = vmatpush1.msra.mxu0 0.0
  %994 = vmatprep.subr.mxu0 0.0
  %995 = vmatpush1.msra.mxu0 0.0
  %996 = vmatprep.subr.mxu0 0.0
  %997 = vmatpush1.msra.mxu0 0.0
  %998 = vmatprep.subr.mxu0 0.0
  %999 = vmatpush1.msra.mxu0 0.0
  %1000 = vmatprep.subr.mxu0 0.0
  %1001 = vmatpush1.msra.mxu0 0.0
  %1002 = vmatprep.subr.mxu0 0.0
  %1003 = vmatpush1.msra.mxu0 0.0
  %1004 = vmatprep.subr.mxu0 0.0
  %1005 = vmatpush1.msra.mxu0 0.0
  %1006 = vmatprep.subr.mxu0 0.0
  %1007 = vmatpush1.msra.mxu0 0.0
  %1008 = vmatprep.subr.mxu0 0.0
  %1009 = vmatpush1.msra.mxu0 0.0
  %1010 = vmatprep.subr.mxu0 0.0
  %1011 = vmatpush1.msra.mxu0 0.0
  %1012 = vmatprep.subr.mxu0 0.0
  %1013 = vmatpush1.msra.mxu0 0.0
  %1014 = vmatprep.subr.mxu0 0.0
  %1015 = vmatpush1.msra.mxu0 0.0
  %1016 = vmatprep.subr.mxu0 0.0
  %1017 = vmatpush1.msra.mxu0 0.0
  %1018 = vmatprep.subr.mxu0 0.0
  %1019 = vmatpush1.msra.mxu0 0.0
  %1020 = vmatprep.subr.mxu0 0.0
  %1021 = vmatpush1.msra.mxu0 0.0
  %1022 = vmatprep.subr.mxu0 0.0
  %1023 = vmatpush1.msra.mxu0 0.0
  %1024 = vmatprep.mubr.f32.mxu0 0.0
  %1025 = vmatmul.mubr.f32.gmra.mrb[0].mxu0 %v958
  %v1026 = vpop.f32.mrb[0].mxu0
  %v1027 = vadd.f32 0.0, %v1026
  %v1028 = vpop.f32.mrb[0].mxu0
  %1029 = vdwg.mxu0
  %v1030 = vadd.f32 %v953, %v1027
  %v1031 = vtanh.pop %v1030
  %v1032 = vxor.u32 %v1030, 2147483648
  %v1033 = vmul.f32 %v1032, 1.442695
  %v1034 = vpow.pop %v1033
  %v1035 = vadd.f32 %v1034, 1.0
  %v1036 = vrcp.pop %v1035
  %v1037 = vmul.f32 1.0, %v1036
  %v1038 = vsel %vm38, %v1031, %v1037
  %v1039 = vmul.f32 %v1038, %v941
  %1041 = vrot.lane.b32.xlu0 %v1038, 64
  %v1042 = vpop.permute.xlu0 %1041
  %v1044 = vmul.f32 %v1038, %v1042
  %1046 = vrot.lane.b32.xlu0 %v1044, 32
  %v1047 = vpop.permute.xlu0 %1046
  %v1049 = vadd.f32 %v1039, %v1047
  %v1050 = vtanh.pop %v1049
  %1052 = vrot.lane.b32.xlu0 %v1050, 64
  %v1053 = vpop.permute.xlu0 %1052
  %v1055 = vmul.f32 %v1038, %v1053
  %1057 = vrot.lane.b32.xlu0 %v1055, 32
  %v1058 = vpop.permute.xlu0 %1057
  %1060 = vst.msk [vmem:[#allocation3 + $0x38] sm:$0xff] %vm58, %v1058
  %v1061 = vld [vmem:[#allocation3] sm:$0xff]
  %v1062 = vld [vmem:[#allocation3 + $0x8] sm:$0xff]
  %v1063 = vld [vmem:[#allocation3 + $0x10] sm:$0xff]
  %v1064 = vld [vmem:[#allocation3 + $0x18] sm:$0xff]
  %v1065 = vld [vmem:[#allocation3 + $0x20] sm:$0xff]
  %v1066 = vld [vmem:[#allocation3 + $0x28] sm:$0xff]
  %v1067 = vld [vmem:[#allocation3 + $0x30] sm:$0xff]
  %v1068 = vld [vmem:[#allocation3 + $0x38] sm:$0xff]
  %v1069 = vld [vmem:[%s4] sm:$0xff]
  %v1070 = vld [vmem:[%s4 + $0x8] sm:$0xff]
  %v1071 = vld [vmem:[%s4 + $0x10] sm:$0xff]
  %v1072 = vld [vmem:[%s4 + $0x18] sm:$0xff]
  %v1073 = vld [vmem:[%s6] sm:$0x1]
  %v1075 = vlaneseq
  %v1076 = vshrl.u32 %v1075, 7
  %v1077 = vsub.s32 0, %v1076
  %v1078 = vrot.slane %v1073, %v1077
  %v1081 = vsel %vm58, %v1061, 0
  %v1084 = vsel %vm58, %v1062, 0
  %v1087 = vsel %vm58, %v1063, 0
  %v1090 = vsel %vm58, %v1064, 0
  %v1093 = vsel %vm58, %v1065, 0
  %v1096 = vsel %vm58, %v1066, 0
  %v1099 = vsel %vm58, %v1067, 0
  %v1102 = vsel %vm58, %v1068, 0
  %1104 = vmatprep.subr.mxu0 0.0
  %1105 = vmatpush1.msra.mxu0 %v1069
  %1106 = vmatprep.subr.mxu0 0.0
  %1107 = vmatpush1.msra.mxu0 %v1070
  %1108 = vmatprep.subr.mxu0 0.0
  %1109 = vmatpush1.msra.mxu0 %v1071
  %1110 = vmatprep.subr.mxu0 0.0
  %1111 = vmatpush1.msra.mxu0 %v1072
  %1112 = vmatprep.subr.mxu0 0.0
  %1113 = vmatpush1.msra.mxu0 0.0
  %1114 = vmatprep.subr.mxu0 0.0
  %1115 = vmatpush1.msra.mxu0 0.0
  %1116 = vmatprep.subr.mxu0 0.0
  %1117 = vmatpush1.msra.mxu0 0.0
  %1118 = vmatprep.subr.mxu0 0.0
  %1119 = vmatpush1.msra.mxu0 0.0
  %1120 = vmatprep.subr.mxu0 0.0
  %1121 = vmatpush1.msra.mxu0 0.0
  %1122 = vmatprep.subr.mxu0 0.0
  %1123 = vmatpush1.msra.mxu0 0.0
  %1124 = vmatprep.subr.mxu0 0.0
  %1125 = vmatpush1.msra.mxu0 0.0
  %1126 = vmatprep.subr.mxu0 0.0
  %1127 = vmatpush1.msra.mxu0 0.0
  %1128 = vmatprep.subr.mxu0 0.0
  %1129 = vmatpush1.msra.mxu0 0.0
  %1130 = vmatprep.subr.mxu0 0.0
  %1131 = vmatpush1.msra.mxu0 0.0
  %1132 = vmatprep.subr.mxu0 0.0
  %1133 = vmatpush1.msra.mxu0 0.0
  %1134 = vmatprep.subr.mxu0 0.0
  %1135 = vmatpush1.msra.mxu0 0.0
  %1136 = vmatprep.subr.mxu0 0.0
  %1137 = vmatpush1.msra.mxu0 0.0
  %1138 = vmatprep.subr.mxu0 0.0
  %1139 = vmatpush1.msra.mxu0 0.0
  %1140 = vmatprep.subr.mxu0 0.0
  %1141 = vmatpush1.msra.mxu0 0.0
  %1142 = vmatprep.subr.mxu0 0.0
  %1143 = vmatpush1.msra.mxu0 0.0
  %1144 = vmatprep.subr.mxu0 0.0
  %1145 = vmatpush1.msra.mxu0 0.0
  %1146 = vmatprep.subr.mxu0 0.0
  %1147 = vmatpush1.msra.mxu0 0.0
  %1148 = vmatprep.subr.mxu0 0.0
  %1149 = vmatpush1.msra.mxu0 0.0
  %1150 = vmatprep.subr.mxu0 0.0
  %1151 = vmatpush1.msra.mxu0 0.0
  %1152 = vmatprep.subr.mxu0 0.0
  %1153 = vmatpush1.msra.mxu0 0.0
  %1154 = vmatprep.subr.mxu0 0.0
  %1155 = vmatpush1.msra.mxu0 0.0
  %1156 = vmatprep.subr.mxu0 0.0
  %1157 = vmatpush1.msra.mxu0 0.0
  %1158 = vmatprep.subr.mxu0 0.0
  %1159 = vmatpush1.msra.mxu0 0.0
  %1160 = vmatprep.subr.mxu0 0.0
  %1161 = vmatpush1.msra.mxu0 0.0
  %1162 = vmatprep.subr.mxu0 0.0
  %1163 = vmatpush1.msra.mxu0 0.0
  %1164 = vmatprep.subr.mxu0 0.0
  %1165 = vmatpush1.msra.mxu0 0.0
  %1166 = vmatprep.subr.mxu0 0.0
  %1167 = vmatpush1.msra.mxu0 0.0
  %1168 = vmatprep.mubr.f32.mxu0 0.0
  %1169 = vmatmul.mubr.f32.gmra.mrb[0].mxu0 %v1081
  %v1170 = vpop.f32.mrb[0].mxu0
  %v1171 = vadd.f32 %v1078, %v1170
  %v1172 = vpop.f32.mrb[0].mxu0
  %1173 = vmatprep.mubr.f32.mxu0 0.0
  %1174 = vmatmul.mubr.f32.gmra.mrb[0].mxu0 %v1084
  %v1175 = vpop.f32.mrb[0].mxu0
  %v1176 = vadd.f32 %v1078, %v1175
  %v1177 = vpop.f32.mrb[0].mxu0
  %1178 = vmatprep.mubr.f32.mxu0 0.0
  %1179 = vmatmul.mubr.f32.gmra.mrb[0].mxu0 %v1087
  %v1180 = vpop.f32.mrb[0].mxu0
  %v1181 = vadd.f32 %v1078, %v1180
  %v1182 = vpop.f32.mrb[0].mxu0
  %1183 = vmatprep.mubr.f32.mxu0 0.0
  %1184 = vmatmul.mubr.f32.gmra.mrb[0].mxu0 %v1090
  %v1185 = vpop.f32.mrb[0].mxu0
  %v1186 = vadd.f32 %v1078, %v1185
  %v1187 = vpop.f32.mrb[0].mxu0
  %1188 = vmatprep.mubr.f32.mxu0 0.0
  %1189 = vmatmul.mubr.f32.gmra.mrb[0].mxu0 %v1093
  %v1190 = vpop.f32.mrb[0].mxu0
  %v1191 = vadd.f32 %v1078, %v1190
  %v1192 = vpop.f32.mrb[0].mxu0
  %1193 = vmatprep.mubr.f32.mxu0 0.0
  %1194 = vmatmul.mubr.f32.gmra.mrb[0].mxu0 %v1096
  %v1195 = vpop.f32.mrb[0].mxu0
  %v1196 = vadd.f32 %v1078, %v1195
  %v1197 = vpop.f32.mrb[0].mxu0
  %1198 = vmatprep.mubr.f32.mxu0 0.0
  %1199 = vmatmul.mubr.f32.gmra.mrb[0].mxu0 %v1099
  %v1200 = vpop.f32.mrb[0].mxu0
  %v1201 = vadd.f32 %v1078, %v1200
  %v1202 = vpop.f32.mrb[0].mxu0
  %1203 = vmatprep.mubr.f32.mxu0 0.0
  %1204 = vmatmul.mubr.f32.gmra.mrb[0].mxu0 %v1102
  %v1205 = vpop.f32.mrb[0].mxu0
  %v1206 = vadd.f32 %v1078, %v1205
  %v1207 = vpop.f32.mrb[0].mxu0
  %1208 = vdwg.mxu0
  %1209 = vst [vmem:[#allocation2] sm:$0xff] %v1171
  %1210 = vst [vmem:[#allocation2 + $0x8] sm:$0xff] %v1176
  %1211 = vst [vmem:[#allocation2 + $0x10] sm:$0xff] %v1181
  %1212 = vst [vmem:[#allocation2 + $0x18] sm:$0xff] %v1186
  %1213 = vst [vmem:[#allocation2 + $0x20] sm:$0xff] %v1191
  %1214 = vst [vmem:[#allocation2 + $0x28] sm:$0xff] %v1196
  %1215 = vst [vmem:[#allocation2 + $0x30] sm:$0xff] %v1201
  %1216 = vst [vmem:[#allocation2 + $0x38] sm:$0xff] %v1206
  %v1217 = vld [vmem:[#allocation2] sm:$0xff]
  %v1218 = vld [vmem:[%s5] sm:$0xff]
  %v1219 = vld [vmem:[%s5 + $0x8] sm:$0xff]
  %v1220 = vld [vmem:[%s5 + $0x10] sm:$0xff]
  %v1221 = vld [vmem:[%s5 + $0x18] sm:$0xff]
  %1222 = vmatprep.subr.mxu0 0.0
  %1223 = vmatpush1.msra.mxu0 %v1218
  %1224 = vmatprep.subr.mxu0 0.0
  %1225 = vmatpush1.msra.mxu0 %v1219
  %1226 = vmatprep.subr.mxu0 0.0
  %1227 = vmatpush1.msra.mxu0 %v1220
  %1228 = vmatprep.subr.mxu0 0.0
  %1229 = vmatpush1.msra.mxu0 %v1221
  %1230 = vmatprep.subr.mxu0 0.0
  %1231 = vmatpush1.msra.mxu0 0.0
  %1232 = vmatprep.subr.mxu0 0.0
  %1233 = vmatpush1.msra.mxu0 0.0
  %1234 = vmatprep.subr.mxu0 0.0
  %1235 = vmatpush1.msra.mxu0 0.0
  %1236 = vmatprep.subr.mxu0 0.0
  %1237 = vmatpush1.msra.mxu0 0.0
  %1238 = vmatprep.subr.mxu0 0.0
  %1239 = vmatpush1.msra.mxu0 0.0
  %1240 = vmatprep.subr.mxu0 0.0
  %1241 = vmatpush1.msra.mxu0 0.0
  %1242 = vmatprep.subr.mxu0 0.0
  %1243 = vmatpush1.msra.mxu0 0.0
  %1244 = vmatprep.subr.mxu0 0.0
  %1245 = vmatpush1.msra.mxu0 0.0
  %1246 = vmatprep.subr.mxu0 0.0
  %1247 = vmatpush1.msra.mxu0 0.0
  %1248 = vmatprep.subr.mxu0 0.0
  %1249 = vmatpush1.msra.mxu0 0.0
  %1250 = vmatprep.subr.mxu0 0.0
  %1251 = vmatpush1.msra.mxu0 0.0
  %1252 = vmatprep.subr.mxu0 0.0
  %1253 = vmatpush1.msra.mxu0 0.0
  %1254 = vmatprep.subr.mxu0 0.0
  %1255 = vmatpush1.msra.mxu0 0.0
  %1256 = vmatprep.subr.mxu0 0.0
  %1257 = vmatpush1.msra.mxu0 0.0
  %1258 = vmatprep.subr.mxu0 0.0
  %1259 = vmatpush1.msra.mxu0 0.0
  %1260 = vmatprep.subr.mxu0 0.0
  %1261 = vmatpush1.msra.mxu0 0.0
  %1262 = vmatprep.subr.mxu0 0.0
  %1263 = vmatpush1.msra.mxu0 0.0
  %1264 = vmatprep.subr.mxu0 0.0
  %1265 = vmatpush1.msra.mxu0 0.0
  %1266 = vmatprep.subr.mxu0 0.0
  %1267 = vmatpush1.msra.mxu0 0.0
  %1268 = vmatprep.subr.mxu0 0.0
  %1269 = vmatpush1.msra.mxu0 0.0
  %1270 = vmatprep.subr.mxu0 0.0
  %1271 = vmatpush1.msra.mxu0 0.0
  %1272 = vmatprep.subr.mxu0 0.0
  %1273 = vmatpush1.msra.mxu0 0.0
  %1274 = vmatprep.subr.mxu0 0.0
  %1275 = vmatpush1.msra.mxu0 0.0
  %1276 = vmatprep.subr.mxu0 0.0
  %1277 = vmatpush1.msra.mxu0 0.0
  %1278 = vmatprep.subr.mxu0 0.0
  %1279 = vmatpush1.msra.mxu0 0.0
  %1280 = vmatprep.subr.mxu0 0.0
  %1281 = vmatpush1.msra.mxu0 0.0
  %1282 = vmatprep.subr.mxu0 0.0
  %1283 = vmatpush1.msra.mxu0 0.0
  %1284 = vmatprep.subr.mxu0 0.0
  %1285 = vmatpush1.msra.mxu0 0.0
  %1286 = vmatprep.mubr.f32.mxu0 0.0
  %1287 = vmatmul.mubr.f32.gmra.mrb[0].mxu0 %v202
  %v1288 = vpop.f32.mrb[0].mxu0
  %v1289 = vadd.f32 0.0, %v1288
  %v1290 = vpop.f32.mrb[0].mxu0
  %1291 = vdwg.mxu0
  %v1292 = vadd.f32 %v1217, %v1289
  %v1293 = vtanh.pop %v1292
  %v1294 = vxor.u32 %v1292, 2147483648
  %v1295 = vmul.f32 %v1294, 1.442695
  %v1296 = vpow.pop %v1295
  %v1297 = vadd.f32 %v1296, 1.0
  %v1298 = vrcp.pop %v1297
  %v1299 = vmul.f32 1.0, %v1298
  %v1300 = vsel %vm38, %v1293, %v1299
  %v1301 = vmul.f32 %v1300, 0.0
  %1303 = vrot.lane.b32.xlu0 %v1300, 64
  %v1304 = vpop.permute.xlu0 %1303
  %v1306 = vmul.f32 %v1300, %v1304
  %1308 = vrot.lane.b32.xlu0 %v1306, 32
  %v1309 = vpop.permute.xlu0 %1308
  %v1311 = vadd.f32 %v1301, %v1309
  %v1312 = vtanh.pop %v1311
  %1314 = vrot.lane.b32.xlu0 %v1312, 64
  %v1315 = vpop.permute.xlu0 %1314
  %v1317 = vmul.f32 %v1300, %v1315
  %v1318 = vld [vmem:[#allocation2 + $0x8] sm:$0xff]
  %1320 = vrot.lane.b32.xlu0 %v1317, 32
  %v1321 = vpop.permute.xlu0 %1320
  %v1322 = vsel %vm58, %v1321, 0
  %1324 = vmatprep.subr.mxu0 0.0
  %1325 = vmatpush1.msra.mxu0 %v1218
  %1326 = vmatprep.subr.mxu0 0.0
  %1327 = vmatpush1.msra.mxu0 %v1219
  %1328 = vmatprep.subr.mxu0 0.0
  %1329 = vmatpush1.msra.mxu0 %v1220
  %1330 = vmatprep.subr.mxu0 0.0
  %1331 = vmatpush1.msra.mxu0 %v1221
  %1332 = vmatprep.subr.mxu0 0.0
  %1333 = vmatpush1.msra.mxu0 0.0
  %1334 = vmatprep.subr.mxu0 0.0
  %1335 = vmatpush1.msra.mxu0 0.0
  %1336 = vmatprep.subr.mxu0 0.0
  %1337 = vmatpush1.msra.mxu0 0.0
  %1338 = vmatprep.subr.mxu0 0.0
  %1339 = vmatpush1.msra.mxu0 0.0
  %1340 = vmatprep.subr.mxu0 0.0
  %1341 = vmatpush1.msra.mxu0 0.0
  %1342 = vmatprep.subr.mxu0 0.0
  %1343 = vmatpush1.msra.mxu0 0.0
  %1344 = vmatprep.subr.mxu0 0.0
  %1345 = vmatpush1.msra.mxu0 0.0
  %1346 = vmatprep.subr.mxu0 0.0
  %1347 = vmatpush1.msra.mxu0 0.0
  %1348 = vmatprep.subr.mxu0 0.0
  %1349 = vmatpush1.msra.mxu0 0.0
  %1350 = vmatprep.subr.mxu0 0.0
  %1351 = vmatpush1.msra.mxu0 0.0
  %1352 = vmatprep.subr.mxu0 0.0
  %1353 = vmatpush1.msra.mxu0 0.0
  %1354 = vmatprep.subr.mxu0 0.0
  %1355 = vmatpush1.msra.mxu0 0.0
  %1356 = vmatprep.subr.mxu0 0.0
  %1357 = vmatpush1.msra.mxu0 0.0
  %1358 = vmatprep.subr.mxu0 0.0
  %1359 = vmatpush1.msra.mxu0 0.0
  %1360 = vmatprep.subr.mxu0 0.0
  %1361 = vmatpush1.msra.mxu0 0.0
  %1362 = vmatprep.subr.mxu0 0.0
  %1363 = vmatpush1.msra.mxu0 0.0
  %1364 = vmatprep.subr.mxu0 0.0
  %1365 = vmatpush1.msra.mxu0 0.0
  %1366 = vmatprep.subr.mxu0 0.0
  %1367 = vmatpush1.msra.mxu0 0.0
  %1368 = vmatprep.subr.mxu0 0.0
  %1369 = vmatpush1.msra.mxu0 0.0
  %1370 = vmatprep.subr.mxu0 0.0
  %1371 = vmatpush1.msra.mxu0 0.0
  %1372 = vmatprep.subr.mxu0 0.0
  %1373 = vmatpush1.msra.mxu0 0.0
  %1374 = vmatprep.subr.mxu0 0.0
  %1375 = vmatpush1.msra.mxu0 0.0
  %1376 = vmatprep.subr.mxu0 0.0
  %1377 = vmatpush1.msra.mxu0 0.0
  %1378 = vmatprep.subr.mxu0 0.0
  %1379 = vmatpush1.msra.mxu0 0.0
  %1380 = vmatprep.subr.mxu0 0.0
  %1381 = vmatpush1.msra.mxu0 0.0
  %1382 = vmatprep.subr.mxu0 0.0
  %1383 = vmatpush1.msra.mxu0 0.0
  %1384 = vmatprep.subr.mxu0 0.0
  %1385 = vmatpush1.msra.mxu0 0.0
  %1386 = vmatprep.subr.mxu0 0.0
  %1387 = vmatpush1.msra.mxu0 0.0
  %1388 = vmatprep.mubr.f32.mxu0 0.0
  %1389 = vmatmul.mubr.f32.gmra.mrb[0].mxu0 %v1322
  %v1390 = vpop.f32.mrb[0].mxu0
  %v1391 = vadd.f32 0.0, %v1390
  %v1392 = vpop.f32.mrb[0].mxu0
  %1393 = vdwg.mxu0
  %v1394 = vadd.f32 %v1318, %v1391
  %v1395 = vtanh.pop %v1394
  %v1396 = vxor.u32 %v1394, 2147483648
  %v1397 = vmul.f32 %v1396, 1.442695
  %v1398 = vpow.pop %v1397
  %v1399 = vadd.f32 %v1398, 1.0
  %v1400 = vrcp.pop %v1399
  %v1401 = vmul.f32 1.0, %v1400
  %v1402 = vsel %vm38, %v1395, %v1401
  %v1403 = vmul.f32 %v1402, %v1311
  %1405 = vrot.lane.b32.xlu0 %v1402, 64
  %v1406 = vpop.permute.xlu0 %1405
  %v1408 = vmul.f32 %v1402, %v1406
  %1410 = vrot.lane.b32.xlu0 %v1408, 32
  %v1411 = vpop.permute.xlu0 %1410
  %v1413 = vadd.f32 %v1403, %v1411
  %v1414 = vtanh.pop %v1413
  %1416 = vrot.lane.b32.xlu0 %v1414, 64
  %v1417 = vpop.permute.xlu0 %1416
  %v1419 = vmul.f32 %v1402, %v1417
  %v1420 = vld [vmem:[#allocation2 + $0x10] sm:$0xff]
  %1422 = vrot.lane.b32.xlu0 %v1419, 32
  %v1423 = vpop.permute.xlu0 %1422
  %v1424 = vsel %vm58, %v1423, 0
  %1426 = vmatprep.subr.mxu0 0.0
  %1427 = vmatpush1.msra.mxu0 %v1218
  %1428 = vmatprep.subr.mxu0 0.0
  %1429 = vmatpush1.msra.mxu0 %v1219
  %1430 = vmatprep.subr.mxu0 0.0
  %1431 = vmatpush1.msra.mxu0 %v1220
  %1432 = vmatprep.subr.mxu0 0.0
  %1433 = vmatpush1.msra.mxu0 %v1221
  %1434 = vmatprep.subr.mxu0 0.0
  %1435 = vmatpush1.msra.mxu0 0.0
  %1436 = vmatprep.subr.mxu0 0.0
  %1437 = vmatpush1.msra.mxu0 0.0
  %1438 = vmatprep.subr.mxu0 0.0
  %1439 = vmatpush1.msra.mxu0 0.0
  %1440 = vmatprep.subr.mxu0 0.0
  %1441 = vmatpush1.msra.mxu0 0.0
  %1442 = vmatprep.subr.mxu0 0.0
  %1443 = vmatpush1.msra.mxu0 0.0
  %1444 = vmatprep.subr.mxu0 0.0
  %1445 = vmatpush1.msra.mxu0 0.0
  %1446 = vmatprep.subr.mxu0 0.0
  %1447 = vmatpush1.msra.mxu0 0.0
  %1448 = vmatprep.subr.mxu0 0.0
  %1449 = vmatpush1.msra.mxu0 0.0
  %1450 = vmatprep.subr.mxu0 0.0
  %1451 = vmatpush1.msra.mxu0 0.0
  %1452 = vmatprep.subr.mxu0 0.0
  %1453 = vmatpush1.msra.mxu0 0.0
  %1454 = vmatprep.subr.mxu0 0.0
  %1455 = vmatpush1.msra.mxu0 0.0
  %1456 = vmatprep.subr.mxu0 0.0
  %1457 = vmatpush1.msra.mxu0 0.0
  %1458 = vmatprep.subr.mxu0 0.0
  %1459 = vmatpush1.msra.mxu0 0.0
  %1460 = vmatprep.subr.mxu0 0.0
  %1461 = vmatpush1.msra.mxu0 0.0
  %1462 = vmatprep.subr.mxu0 0.0
  %1463 = vmatpush1.msra.mxu0 0.0
  %1464 = vmatprep.subr.mxu0 0.0
  %1465 = vmatpush1.msra.mxu0 0.0
  %1466 = vmatprep.subr.mxu0 0.0
  %1467 = vmatpush1.msra.mxu0 0.0
  %1468 = vmatprep.subr.mxu0 0.0
  %1469 = vmatpush1.msra.mxu0 0.0
  %1470 = vmatprep.subr.mxu0 0.0
  %1471 = vmatpush1.msra.mxu0 0.0
  %1472 = vmatprep.subr.mxu0 0.0
  %1473 = vmatpush1.msra.mxu0 0.0
  %1474 = vmatprep.subr.mxu0 0.0
  %1475 = vmatpush1.msra.mxu0 0.0
  %1476 = vmatprep.subr.mxu0 0.0
  %1477 = vmatpush1.msra.mxu0 0.0
  %1478 = vmatprep.subr.mxu0 0.0
  %1479 = vmatpush1.msra.mxu0 0.0
  %1480 = vmatprep.subr.mxu0 0.0
  %1481 = vmatpush1.msra.mxu0 0.0
  %1482 = vmatprep.subr.mxu0 0.0
  %1483 = vmatpush1.msra.mxu0 0.0
  %1484 = vmatprep.subr.mxu0 0.0
  %1485 = vmatpush1.msra.mxu0 0.0
  %1486 = vmatprep.subr.mxu0 0.0
  %1487 = vmatpush1.msra.mxu0 0.0
  %1488 = vmatprep.subr.mxu0 0.0
  %1489 = vmatpush1.msra.mxu0 0.0
  %1490 = vmatprep.mubr.f32.mxu0 0.0
  %1491 = vmatmul.mubr.f32.gmra.mrb[0].mxu0 %v1424
  %v1492 = vpop.f32.mrb[0].mxu0
  %v1493 = vadd.f32 0.0, %v1492
  %v1494 = vpop.f32.mrb[0].mxu0
  %1495 = vdwg.mxu0
  %v1496 = vadd.f32 %v1420, %v1493
  %v1497 = vtanh.pop %v1496
  %v1498 = vxor.u32 %v1496, 2147483648
  %v1499 = vmul.f32 %v1498, 1.442695
  %v1500 = vpow.pop %v1499
  %v1501 = vadd.f32 %v1500, 1.0
  %v1502 = vrcp.pop %v1501
  %v1503 = vmul.f32 1.0, %v1502
  %v1504 = vsel %vm38, %v1497, %v1503
  %v1505 = vmul.f32 %v1504, %v1413
  %1507 = vrot.lane.b32.xlu0 %v1504, 64
  %v1508 = vpop.permute.xlu0 %1507
  %v1510 = vmul.f32 %v1504, %v1508
  %1512 = vrot.lane.b32.xlu0 %v1510, 32
  %v1513 = vpop.permute.xlu0 %1512
  %v1515 = vadd.f32 %v1505, %v1513
  %v1516 = vtanh.pop %v1515
  %1518 = vrot.lane.b32.xlu0 %v1516, 64
  %v1519 = vpop.permute.xlu0 %1518
  %v1521 = vmul.f32 %v1504, %v1519
  %v1522 = vld [vmem:[#allocation2 + $0x18] sm:$0xff]
  %1524 = vrot.lane.b32.xlu0 %v1521, 32
  %v1525 = vpop.permute.xlu0 %1524
  %v1526 = vsel %vm58, %v1525, 0
  %1528 = vmatprep.subr.mxu0 0.0
  %1529 = vmatpush1.msra.mxu0 %v1218
  %1530 = vmatprep.subr.mxu0 0.0
  %1531 = vmatpush1.msra.mxu0 %v1219
  %1532 = vmatprep.subr.mxu0 0.0
  %1533 = vmatpush1.msra.mxu0 %v1220
  %1534 = vmatprep.subr.mxu0 0.0
  %1535 = vmatpush1.msra.mxu0 %v1221
  %1536 = vmatprep.subr.mxu0 0.0
  %1537 = vmatpush1.msra.mxu0 0.0
  %1538 = vmatprep.subr.mxu0 0.0
  %1539 = vmatpush1.msra.mxu0 0.0
  %1540 = vmatprep.subr.mxu0 0.0
  %1541 = vmatpush1.msra.mxu0 0.0
  %1542 = vmatprep.subr.mxu0 0.0
  %1543 = vmatpush1.msra.mxu0 0.0
  %1544 = vmatprep.subr.mxu0 0.0
  %1545 = vmatpush1.msra.mxu0 0.0
  %1546 = vmatprep.subr.mxu0 0.0
  %1547 = vmatpush1.msra.mxu0 0.0
  %1548 = vmatprep.subr.mxu0 0.0
  %1549 = vmatpush1.msra.mxu0 0.0
  %1550 = vmatprep.subr.mxu0 0.0
  %1551 = vmatpush1.msra.mxu0 0.0
  %1552 = vmatprep.subr.mxu0 0.0
  %1553 = vmatpush1.msra.mxu0 0.0
  %1554 = vmatprep.subr.mxu0 0.0
  %1555 = vmatpush1.msra.mxu0 0.0
  %1556 = vmatprep.subr.mxu0 0.0
  %1557 = vmatpush1.msra.mxu0 0.0
  %1558 = vmatprep.subr.mxu0 0.0
  %1559 = vmatpush1.msra.mxu0 0.0
  %1560 = vmatprep.subr.mxu0 0.0
  %1561 = vmatpush1.msra.mxu0 0.0
  %1562 = vmatprep.subr.mxu0 0.0
  %1563 = vmatpush1.msra.mxu0 0.0
  %1564 = vmatprep.subr.mxu0 0.0
  %1565 = vmatpush1.msra.mxu0 0.0
  %1566 = vmatprep.subr.mxu0 0.0
  %1567 = vmatpush1.msra.mxu0 0.0
  %1568 = vmatprep.subr.mxu0 0.0
  %1569 = vmatpush1.msra.mxu0 0.0
  %1570 = vmatprep.subr.mxu0 0.0
  %1571 = vmatpush1.msra.mxu0 0.0
  %1572 = vmatprep.subr.mxu0 0.0
  %1573 = vmatpush1.msra.mxu0 0.0
  %1574 = vmatprep.subr.mxu0 0.0
  %1575 = vmatpush1.msra.mxu0 0.0
  %1576 = vmatprep.subr.mxu0 0.0
  %1577 = vmatpush1.msra.mxu0 0.0
  %1578 = vmatprep.subr.mxu0 0.0
  %1579 = vmatpush1.msra.mxu0 0.0
  %1580 = vmatprep.subr.mxu0 0.0
  %1581 = vmatpush1.msra.mxu0 0.0
  %1582 = vmatprep.subr.mxu0 0.0
  %1583 = vmatpush1.msra.mxu0 0.0
  %1584 = vmatprep.subr.mxu0 0.0
  %1585 = vmatpush1.msra.mxu0 0.0
  %1586 = vmatprep.subr.mxu0 0.0
  %1587 = vmatpush1.msra.mxu0 0.0
  %1588 = vmatprep.subr.mxu0 0.0
  %1589 = vmatpush1.msra.mxu0 0.0
  %1590 = vmatprep.subr.mxu0 0.0
  %1591 = vmatpush1.msra.mxu0 0.0
  %1592 = vmatprep.mubr.f32.mxu0 0.0
  %1593 = vmatmul.mubr.f32.gmra.mrb[0].mxu0 %v1526
  %v1594 = vpop.f32.mrb[0].mxu0
  %v1595 = vadd.f32 0.0, %v1594
  %v1596 = vpop.f32.mrb[0].mxu0
  %1597 = vdwg.mxu0
  %v1598 = vadd.f32 %v1522, %v1595
  %v1599 = vtanh.pop %v1598
  %v1600 = vxor.u32 %v1598, 2147483648
  %v1601 = vmul.f32 %v1600, 1.442695
  %v1602 = vpow.pop %v1601
  %v1603 = vadd.f32 %v1602, 1.0
  %v1604 = vrcp.pop %v1603
  %v1605 = vmul.f32 1.0, %v1604
  %v1606 = vsel %vm38, %v1599, %v1605
  %v1607 = vmul.f32 %v1606, %v1515
  %1609 = vrot.lane.b32.xlu0 %v1606, 64
  %v1610 = vpop.permute.xlu0 %1609
  %v1612 = vmul.f32 %v1606, %v1610
  %1614 = vrot.lane.b32.xlu0 %v1612, 32
  %v1615 = vpop.permute.xlu0 %1614
  %v1617 = vadd.f32 %v1607, %v1615
  %v1618 = vtanh.pop %v1617
  %1620 = vrot.lane.b32.xlu0 %v1618, 64
  %v1621 = vpop.permute.xlu0 %1620
  %v1623 = vmul.f32 %v1606, %v1621
  %v1624 = vld [vmem:[#allocation2 + $0x20] sm:$0xff]
  %1626 = vrot.lane.b32.xlu0 %v1623, 32
  %v1627 = vpop.permute.xlu0 %1626
  %v1628 = vsel %vm58, %v1627, 0
  %1630 = vmatprep.subr.mxu0 0.0
  %1631 = vmatpush1.msra.mxu0 %v1218
  %1632 = vmatprep.subr.mxu0 0.0
  %1633 = vmatpush1.msra.mxu0 %v1219
  %1634 = vmatprep.subr.mxu0 0.0
  %1635 = vmatpush1.msra.mxu0 %v1220
  %1636 = vmatprep.subr.mxu0 0.0
  %1637 = vmatpush1.msra.mxu0 %v1221
  %1638 = vmatprep.subr.mxu0 0.0
  %1639 = vmatpush1.msra.mxu0 0.0
  %1640 = vmatprep.subr.mxu0 0.0
  %1641 = vmatpush1.msra.mxu0 0.0
  %1642 = vmatprep.subr.mxu0 0.0
  %1643 = vmatpush1.msra.mxu0 0.0
  %1644 = vmatprep.subr.mxu0 0.0
  %1645 = vmatpush1.msra.mxu0 0.0
  %1646 = vmatprep.subr.mxu0 0.0
  %1647 = vmatpush1.msra.mxu0 0.0
  %1648 = vmatprep.subr.mxu0 0.0
  %1649 = vmatpush1.msra.mxu0 0.0
  %1650 = vmatprep.subr.mxu0 0.0
  %1651 = vmatpush1.msra.mxu0 0.0
  %1652 = vmatprep.subr.mxu0 0.0
  %1653 = vmatpush1.msra.mxu0 0.0
  %1654 = vmatprep.subr.mxu0 0.0
  %1655 = vmatpush1.msra.mxu0 0.0
  %1656 = vmatprep.subr.mxu0 0.0
  %1657 = vmatpush1.msra.mxu0 0.0
  %1658 = vmatprep.subr.mxu0 0.0
  %1659 = vmatpush1.msra.mxu0 0.0
  %1660 = vmatprep.subr.mxu0 0.0
  %1661 = vmatpush1.msra.mxu0 0.0
  %1662 = vmatprep.subr.mxu0 0.0
  %1663 = vmatpush1.msra.mxu0 0.0
  %1664 = vmatprep.subr.mxu0 0.0
  %1665 = vmatpush1.msra.mxu0 0.0
  %1666 = vmatprep.subr.mxu0 0.0
  %1667 = vmatpush1.msra.mxu0 0.0
  %1668 = vmatprep.subr.mxu0 0.0
  %1669 = vmatpush1.msra.mxu0 0.0
  %1670 = vmatprep.subr.mxu0 0.0
  %1671 = vmatpush1.msra.mxu0 0.0
  %1672 = vmatprep.subr.mxu0 0.0
  %1673 = vmatpush1.msra.mxu0 0.0
  %1674 = vmatprep.subr.mxu0 0.0
  %1675 = vmatpush1.msra.mxu0 0.0
  %1676 = vmatprep.subr.mxu0 0.0
  %1677 = vmatpush1.msra.mxu0 0.0
  %1678 = vmatprep.subr.mxu0 0.0
  %1679 = vmatpush1.msra.mxu0 0.0
  %1680 = vmatprep.subr.mxu0 0.0
  %1681 = vmatpush1.msra.mxu0 0.0
  %1682 = vmatprep.subr.mxu0 0.0
  %1683 = vmatpush1.msra.mxu0 0.0
  %1684 = vmatprep.subr.mxu0 0.0
  %1685 = vmatpush1.msra.mxu0 0.0
  %1686 = vmatprep.subr.mxu0 0.0
  %1687 = vmatpush1.msra.mxu0 0.0
  %1688 = vmatprep.subr.mxu0 0.0
  %1689 = vmatpush1.msra.mxu0 0.0
  %1690 = vmatprep.subr.mxu0 0.0
  %1691 = vmatpush1.msra.mxu0 0.0
  %1692 = vmatprep.subr.mxu0 0.0
  %1693 = vmatpush1.msra.mxu0 0.0
  %1694 = vmatprep.mubr.f32.mxu0 0.0
  %1695 = vmatmul.mubr.f32.gmra.mrb[0].mxu0 %v1628
  %v1696 = vpop.f32.mrb[0].mxu0
  %v1697 = vadd.f32 0.0, %v1696
  %v1698 = vpop.f32.mrb[0].mxu0
  %1699 = vdwg.mxu0
  %v1700 = vadd.f32 %v1624, %v1697
  %v1701 = vtanh.pop %v1700
  %v1702 = vxor.u32 %v1700, 2147483648
  %v1703 = vmul.f32 %v1702, 1.442695
  %v1704 = vpow.pop %v1703
  %v1705 = vadd.f32 %v1704, 1.0
  %v1706 = vrcp.pop %v1705
  %v1707 = vmul.f32 1.0, %v1706
  %v1708 = vsel %vm38, %v1701, %v1707
  %v1709 = vmul.f32 %v1708, %v1617
  %1711 = vrot.lane.b32.xlu0 %v1708, 64
  %v1712 = vpop.permute.xlu0 %1711
  %v1714 = vmul.f32 %v1708, %v1712
  %1716 = vrot.lane.b32.xlu0 %v1714, 32
  %v1717 = vpop.permute.xlu0 %1716
  %v1719 = vadd.f32 %v1709, %v1717
  %v1720 = vtanh.pop %v1719
  %1722 = vrot.lane.b32.xlu0 %v1720, 64
  %v1723 = vpop.permute.xlu0 %1722
  %v1725 = vmul.f32 %v1708, %v1723
  %v1726 = vld [vmem:[#allocation2 + $0x28] sm:$0xff]
  %1728 = vrot.lane.b32.xlu0 %v1725, 32
  %v1729 = vpop.permute.xlu0 %1728
  %v1730 = vsel %vm58, %v1729, 0
  %1732 = vmatprep.subr.mxu0 0.0
  %1733 = vmatpush1.msra.mxu0 %v1218
  %1734 = vmatprep.subr.mxu0 0.0
  %1735 = vmatpush1.msra.mxu0 %v1219
  %1736 = vmatprep.subr.mxu0 0.0
  %1737 = vmatpush1.msra.mxu0 %v1220
  %1738 = vmatprep.subr.mxu0 0.0
  %1739 = vmatpush1.msra.mxu0 %v1221
  %1740 = vmatprep.subr.mxu0 0.0
  %1741 = vmatpush1.msra.mxu0 0.0
  %1742 = vmatprep.subr.mxu0 0.0
  %1743 = vmatpush1.msra.mxu0 0.0
  %1744 = vmatprep.subr.mxu0 0.0
  %1745 = vmatpush1.msra.mxu0 0.0
  %1746 = vmatprep.subr.mxu0 0.0
  %1747 = vmatpush1.msra.mxu0 0.0
  %1748 = vmatprep.subr.mxu0 0.0
  %1749 = vmatpush1.msra.mxu0 0.0
  %1750 = vmatprep.subr.mxu0 0.0
  %1751 = vmatpush1.msra.mxu0 0.0
  %1752 = vmatprep.subr.mxu0 0.0
  %1753 = vmatpush1.msra.mxu0 0.0
  %1754 = vmatprep.subr.mxu0 0.0
  %1755 = vmatpush1.msra.mxu0 0.0
  %1756 = vmatprep.subr.mxu0 0.0
  %1757 = vmatpush1.msra.mxu0 0.0
  %1758 = vmatprep.subr.mxu0 0.0
  %1759 = vmatpush1.msra.mxu0 0.0
  %1760 = vmatprep.subr.mxu0 0.0
  %1761 = vmatpush1.msra.mxu0 0.0
  %1762 = vmatprep.subr.mxu0 0.0
  %1763 = vmatpush1.msra.mxu0 0.0
  %1764 = vmatprep.subr.mxu0 0.0
  %1765 = vmatpush1.msra.mxu0 0.0
  %1766 = vmatprep.subr.mxu0 0.0
  %1767 = vmatpush1.msra.mxu0 0.0
  %1768 = vmatprep.subr.mxu0 0.0
  %1769 = vmatpush1.msra.mxu0 0.0
  %1770 = vmatprep.subr.mxu0 0.0
  %1771 = vmatpush1.msra.mxu0 0.0
  %1772 = vmatprep.subr.mxu0 0.0
  %1773 = vmatpush1.msra.mxu0 0.0
  %1774 = vmatprep.subr.mxu0 0.0
  %1775 = vmatpush1.msra.mxu0 0.0
  %1776 = vmatprep.subr.mxu0 0.0
  %1777 = vmatpush1.msra.mxu0 0.0
  %1778 = vmatprep.subr.mxu0 0.0
  %1779 = vmatpush1.msra.mxu0 0.0
  %1780 = vmatprep.subr.mxu0 0.0
  %1781 = vmatpush1.msra.mxu0 0.0
  %1782 = vmatprep.subr.mxu0 0.0
  %1783 = vmatpush1.msra.mxu0 0.0
  %1784 = vmatprep.subr.mxu0 0.0
  %1785 = vmatpush1.msra.mxu0 0.0
  %1786 = vmatprep.subr.mxu0 0.0
  %1787 = vmatpush1.msra.mxu0 0.0
  %1788 = vmatprep.subr.mxu0 0.0
  %1789 = vmatpush1.msra.mxu0 0.0
  %1790 = vmatprep.subr.mxu0 0.0
  %1791 = vmatpush1.msra.mxu0 0.0
  %1792 = vmatprep.subr.mxu0 0.0
  %1793 = vmatpush1.msra.mxu0 0.0
  %1794 = vmatprep.subr.mxu0 0.0
  %1795 = vmatpush1.msra.mxu0 0.0
  %1796 = vmatprep.mubr.f32.mxu0 0.0
  %1797 = vmatmul.mubr.f32.gmra.mrb[0].mxu0 %v1730
  %v1798 = vpop.f32.mrb[0].mxu0
  %v1799 = vadd.f32 0.0, %v1798
  %v1800 = vpop.f32.mrb[0].mxu0
  %1801 = vdwg.mxu0
  %v1802 = vadd.f32 %v1726, %v1799
  %v1803 = vtanh.pop %v1802
  %v1804 = vxor.u32 %v1802, 2147483648
  %v1805 = vmul.f32 %v1804, 1.442695
  %v1806 = vpow.pop %v1805
  %v1807 = vadd.f32 %v1806, 1.0
  %v1808 = vrcp.pop %v1807
  %v1809 = vmul.f32 1.0, %v1808
  %v1810 = vsel %vm38, %v1803, %v1809
  %v1811 = vmul.f32 %v1810, %v1719
  %1813 = vrot.lane.b32.xlu0 %v1810, 64
  %v1814 = vpop.permute.xlu0 %1813
  %v1816 = vmul.f32 %v1810, %v1814
  %1818 = vrot.lane.b32.xlu0 %v1816, 32
  %v1819 = vpop.permute.xlu0 %1818
  %v1821 = vadd.f32 %v1811, %v1819
  %v1822 = vtanh.pop %v1821
  %1824 = vrot.lane.b32.xlu0 %v1822, 64
  %v1825 = vpop.permute.xlu0 %1824
  %v1827 = vmul.f32 %v1810, %v1825
  %v1828 = vld [vmem:[#allocation2 + $0x30] sm:$0xff]
  %1830 = vrot.lane.b32.xlu0 %v1827, 32
  %v1831 = vpop.permute.xlu0 %1830
  %v1832 = vsel %vm58, %v1831, 0
  %1834 = vmatprep.subr.mxu0 0.0
  %1835 = vmatpush1.msra.mxu0 %v1218
  %1836 = vmatprep.subr.mxu0 0.0
  %1837 = vmatpush1.msra.mxu0 %v1219
  %1838 = vmatprep.subr.mxu0 0.0
  %1839 = vmatpush1.msra.mxu0 %v1220
  %1840 = vmatprep.subr.mxu0 0.0
  %1841 = vmatpush1.msra.mxu0 %v1221
  %1842 = vmatprep.subr.mxu0 0.0
  %1843 = vmatpush1.msra.mxu0 0.0
  %1844 = vmatprep.subr.mxu0 0.0
  %1845 = vmatpush1.msra.mxu0 0.0
  %1846 = vmatprep.subr.mxu0 0.0
  %1847 = vmatpush1.msra.mxu0 0.0
  %1848 = vmatprep.subr.mxu0 0.0
  %1849 = vmatpush1.msra.mxu0 0.0
  %1850 = vmatprep.subr.mxu0 0.0
  %1851 = vmatpush1.msra.mxu0 0.0
  %1852 = vmatprep.subr.mxu0 0.0
  %1853 = vmatpush1.msra.mxu0 0.0
  %1854 = vmatprep.subr.mxu0 0.0
  %1855 = vmatpush1.msra.mxu0 0.0
  %1856 = vmatprep.subr.mxu0 0.0
  %1857 = vmatpush1.msra.mxu0 0.0
  %1858 = vmatprep.subr.mxu0 0.0
  %1859 = vmatpush1.msra.mxu0 0.0
  %1860 = vmatprep.subr.mxu0 0.0
  %1861 = vmatpush1.msra.mxu0 0.0
  %1862 = vmatprep.subr.mxu0 0.0
  %1863 = vmatpush1.msra.mxu0 0.0
  %1864 = vmatprep.subr.mxu0 0.0
  %1865 = vmatpush1.msra.mxu0 0.0
  %1866 = vmatprep.subr.mxu0 0.0
  %1867 = vmatpush1.msra.mxu0 0.0
  %1868 = vmatprep.subr.mxu0 0.0
  %1869 = vmatpush1.msra.mxu0 0.0
  %1870 = vmatprep.subr.mxu0 0.0
  %1871 = vmatpush1.msra.mxu0 0.0
  %1872 = vmatprep.subr.mxu0 0.0
  %1873 = vmatpush1.msra.mxu0 0.0
  %1874 = vmatprep.subr.mxu0 0.0
  %1875 = vmatpush1.msra.mxu0 0.0
  %1876 = vmatprep.subr.mxu0 0.0
  %1877 = vmatpush1.msra.mxu0 0.0
  %1878 = vmatprep.subr.mxu0 0.0
  %1879 = vmatpush1.msra.mxu0 0.0
  %1880 = vmatprep.subr.mxu0 0.0
  %1881 = vmatpush1.msra.mxu0 0.0
  %1882 = vmatprep.subr.mxu0 0.0
  %1883 = vmatpush1.msra.mxu0 0.0
  %1884 = vmatprep.subr.mxu0 0.0
  %1885 = vmatpush1.msra.mxu0 0.0
  %1886 = vmatprep.subr.mxu0 0.0
  %1887 = vmatpush1.msra.mxu0 0.0
  %1888 = vmatprep.subr.mxu0 0.0
  %1889 = vmatpush1.msra.mxu0 0.0
  %1890 = vmatprep.subr.mxu0 0.0
  %1891 = vmatpush1.msra.mxu0 0.0
  %1892 = vmatprep.subr.mxu0 0.0
  %1893 = vmatpush1.msra.mxu0 0.0
  %1894 = vmatprep.subr.mxu0 0.0
  %1895 = vmatpush1.msra.mxu0 0.0
  %1896 = vmatprep.subr.mxu0 0.0
  %1897 = vmatpush1.msra.mxu0 0.0
  %1898 = vmatprep.mubr.f32.mxu0 0.0
  %1899 = vmatmul.mubr.f32.gmra.mrb[0].mxu0 %v1832
  %v1900 = vpop.f32.mrb[0].mxu0
  %v1901 = vadd.f32 0.0, %v1900
  %v1902 = vpop.f32.mrb[0].mxu0
  %1903 = vdwg.mxu0
  %v1904 = vadd.f32 %v1828, %v1901
  %v1905 = vtanh.pop %v1904
  %v1906 = vxor.u32 %v1904, 2147483648
  %v1907 = vmul.f32 %v1906, 1.442695
  %v1908 = vpow.pop %v1907
  %v1909 = vadd.f32 %v1908, 1.0
  %v1910 = vrcp.pop %v1909
  %v1911 = vmul.f32 1.0, %v1910
  %v1912 = vsel %vm38, %v1905, %v1911
  %v1913 = vmul.f32 %v1912, %v1821
  %1915 = vrot.lane.b32.xlu0 %v1912, 64
  %v1916 = vpop.permute.xlu0 %1915
  %v1918 = vmul.f32 %v1912, %v1916
  %1920 = vrot.lane.b32.xlu0 %v1918, 32
  %v1921 = vpop.permute.xlu0 %1920
  %v1923 = vadd.f32 %v1913, %v1921
  %v1924 = vtanh.pop %v1923
  %1926 = vrot.lane.b32.xlu0 %v1924, 64
  %v1927 = vpop.permute.xlu0 %1926
  %v1929 = vmul.f32 %v1912, %v1927
  %v1930 = vld [vmem:[#allocation2 + $0x38] sm:$0xff]
  %1932 = vrot.lane.b32.xlu0 %v1929, 32
  %v1933 = vpop.permute.xlu0 %1932
  %v1934 = vsel %vm58, %v1933, 0
  %1936 = vmatprep.subr.mxu0 0.0
  %1937 = vmatpush1.msra.mxu0 %v1218
  %1938 = vmatprep.subr.mxu0 0.0
  %1939 = vmatpush1.msra.mxu0 %v1219
  %1940 = vmatprep.subr.mxu0 0.0
  %1941 = vmatpush1.msra.mxu0 %v1220
  %1942 = vmatprep.subr.mxu0 0.0
  %1943 = vmatpush1.msra.mxu0 %v1221
  %1944 = vmatprep.subr.mxu0 0.0
  %1945 = vmatpush1.msra.mxu0 0.0
  %1946 = vmatprep.subr.mxu0 0.0
  %1947 = vmatpush1.msra.mxu0 0.0
  %1948 = vmatprep.subr.mxu0 0.0
  %1949 = vmatpush1.msra.mxu0 0.0
  %1950 = vmatprep.subr.mxu0 0.0
  %1951 = vmatpush1.msra.mxu0 0.0
  %1952 = vmatprep.subr.mxu0 0.0
  %1953 = vmatpush1.msra.mxu0 0.0
  %1954 = vmatprep.subr.mxu0 0.0
  %1955 = vmatpush1.msra.mxu0 0.0
  %1956 = vmatprep.subr.mxu0 0.0
  %1957 = vmatpush1.msra.mxu0 0.0
  %1958 = vmatprep.subr.mxu0 0.0
  %1959 = vmatpush1.msra.mxu0 0.0
  %1960 = vmatprep.subr.mxu0 0.0
  %1961 = vmatpush1.msra.mxu0 0.0
  %1962 = vmatprep.subr.mxu0 0.0
  %1963 = vmatpush1.msra.mxu0 0.0
  %1964 = vmatprep.subr.mxu0 0.0
  %1965 = vmatpush1.msra.mxu0 0.0
  %1966 = vmatprep.subr.mxu0 0.0
  %1967 = vmatpush1.msra.mxu0 0.0
  %1968 = vmatprep.subr.mxu0 0.0
  %1969 = vmatpush1.msra.mxu0 0.0
  %1970 = vmatprep.subr.mxu0 0.0
  %1971 = vmatpush1.msra.mxu0 0.0
  %1972 = vmatprep.subr.mxu0 0.0
  %1973 = vmatpush1.msra.mxu0 0.0
  %1974 = vmatprep.subr.mxu0 0.0
  %1975 = vmatpush1.msra.mxu0 0.0
  %1976 = vmatprep.subr.mxu0 0.0
  %1977 = vmatpush1.msra.mxu0 0.0
  %1978 = vmatprep.subr.mxu0 0.0
  %1979 = vmatpush1.msra.mxu0 0.0
  %1980 = vmatprep.subr.mxu0 0.0
  %1981 = vmatpush1.msra.mxu0 0.0
  %1982 = vmatprep.subr.mxu0 0.0
  %1983 = vmatpush1.msra.mxu0 0.0
  %1984 = vmatprep.subr.mxu0 0.0
  %1985 = vmatpush1.msra.mxu0 0.0
  %1986 = vmatprep.subr.mxu0 0.0
  %1987 = vmatpush1.msra.mxu0 0.0
  %1988 = vmatprep.subr.mxu0 0.0
  %1989 = vmatpush1.msra.mxu0 0.0
  %1990 = vmatprep.subr.mxu0 0.0
  %1991 = vmatpush1.msra.mxu0 0.0
  %1992 = vmatprep.subr.mxu0 0.0
  %1993 = vmatpush1.msra.mxu0 0.0
  %1994 = vmatprep.subr.mxu0 0.0
  %1995 = vmatpush1.msra.mxu0 0.0
  %1996 = vmatprep.subr.mxu0 0.0
  %1997 = vmatpush1.msra.mxu0 0.0
  %1998 = vmatprep.subr.mxu0 0.0
  %1999 = vmatpush1.msra.mxu0 0.0
  %2000 = vmatprep.mubr.f32.mxu0 0.0
  %2001 = vmatmul.mubr.f32.gmra.mrb[0].mxu0 %v1934
  %v2002 = vpop.f32.mrb[0].mxu0
  %v2003 = vadd.f32 0.0, %v2002
  %v2004 = vpop.f32.mrb[0].mxu0
  %2005 = vdwg.mxu0
  %v2006 = vadd.f32 %v1930, %v2003
  %v2007 = vtanh.pop %v2006
  %v2008 = vxor.u32 %v2006, 2147483648
  %v2009 = vmul.f32 %v2008, 1.442695
  %v2010 = vpow.pop %v2009
  %v2011 = vadd.f32 %v2010, 1.0
  %v2012 = vrcp.pop %v2011
  %v2013 = vmul.f32 1.0, %v2012
  %v2014 = vsel %vm38, %v2007, %v2013
  %v2015 = vmul.f32 %v2014, %v1923
  %2017 = vrot.lane.b32.xlu0 %v2014, 64
  %v2018 = vpop.permute.xlu0 %2017
  %v2020 = vmul.f32 %v2014, %v2018
  %2022 = vrot.lane.b32.xlu0 %v2020, 32
  %v2023 = vpop.permute.xlu0 %2022
  %v2025 = vadd.f32 %v2015, %v2023
  %v2026 = vtanh.pop %v2025
  %2028 = vrot.lane.b32.xlu0 %v2026, 64
  %v2029 = vpop.permute.xlu0 %2028
  %v2031 = vmul.f32 %v2014, %v2029
  %2033 = vrot.lane.b32.xlu0 %v2031, 64
  %v2034 = vpop.permute.xlu0 %2033
  %v2036 = vsel %vm58, %v1058, %v2034
  %v2037 = vld [vmem:[%s7] sm:$0x1]
  %v2039 = vlaneseq
  %v2040 = vshrl.u32 %v2039, 7
  %v2041 = vsub.s32 0, %v2040
  %v2042 = vrot.slane %v2037, %v2041
  %v2044 = vmul.f32 %v2036, %v2042
  %vm2045 = vcmask 523264
  %v2046 = vsel %vm2045, %v2044, 0.0
  %2047 = vadd.xlane.f32.xlu0 %v2046
  %v2048 = vpop.xlane.xlu0 %2047
  %v2049 = vld [vmem:[#allocation4] sm:$0x1]
  %v2051 = vlaneseq
  %v2052 = vshrl.u32 %v2051, 7
  %v2053 = vsub.s32 0, %v2052
  %v2054 = vrot.slane %v2049, %v2053
  %v2056 = vadd.f32 %v2048, %v2054
  %vm2057 = vcmask 7168
  %2058 = vst.msk [vmem:[%s9] sm:$0xff] %vm2057, %v2056
  // Predicated region
  $region38: #{net_forward.1} parent=0 // pred_check
    _
  $region39: #{net_forward.1} parent=0 // pred_check_branch
    %2060 = sbr.rel (0) target = $region41
  $region40: #{net_forward.1} parent=0 // pred_region
    _
  $region41: #{net_forward.1} parent=0 // pred_fallthru
    _
  // Predicated region
  $region42: #{net_forward.1} parent=0 // pred_check
    _
  $region43: #{net_forward.1} parent=0 // pred_check_branch
    %2062 = sbr.rel (0) target = $region45
  $region44: #{net_forward.1} parent=0 // pred_region
    _
  $region45: #{net_forward.1} parent=0 // pred_fallthru
    _

</llo_original>
